<compile_context>
chip_gen: v7x
topology: tpu7x:2x2x1
jax: 0.10.0
libtpu: 0.0.40
codegen_flags: <defaults>
</compile_context>

<pallas_src>
import numpy as np
import jax
import jax.numpy as jnp
from jax.experimental import pallas as pl
from jax.experimental.pallas import tpu as pltpu


# ----------------------------------------------------------------------------
# Pallas kernel: full LlamaBlock forward for one block of batch elements.
# ----------------------------------------------------------------------------
def llama_block_kernel(
    x_ref,        # (BB, S, D)  f32
    scale_ref,    # (S, D)      f32   RMSNorm scale
    cos_ref,      # (S, D)      f32   RoPE cos (each pair value repeated twice)
    sina_ref,     # (S, D)      f32   +sin on even lanes, 0 on odd  (multiplies t[j+1])
    sinb_ref,     # (S, D)      f32   -sin on odd lanes, 0 on even  (multiplies t[j-1])
    wqkv_ref,     # (D, 3*H*D)  bf16  fused Q/K/V projection (heads stacked on N)
    wo_ref,       # (H*D, D)    bf16  output projection
    bo_ref,       # (1, D)      f32
    w1_ref,       # (D, D)      bf16  feedforward first linear
    b1_ref,       # (1, D)      f32
    wgl_ref,      # (D, 2*D)    bf16  SwiGLU gate & linear stacked on N
    bgl_ref,      # (1, 2*D)    f32
    beta_ref,     # (1,) SMEM   f32   SwiGLU beta
    out_ref,      # (BB, S, D)  f32
):
    BB, S, D = x_ref.shape
    HD = wo_ref.shape[0]
    H = HD // D
    M = BB * S

    x = x_ref[...]                       # (BB, S, D)
    scale = scale_ref[...]               # (S, D)
    inv_sd = jnp.float32(1.0 / (S * D))

    def rmsnorm(v):
        # per-batch-element norm over (seq, d_model), matching the torch RMSNorm
        ss = jnp.sum(jnp.sum(v * v, axis=2, keepdims=True), axis=1, keepdims=True)
        inv_rms = jax.lax.rsqrt(ss * inv_sd)          # EUP rsqrt, no divide
        return scale[None, :, :] * (v * inv_rms)

    # ---- RMSNorm #1 ----
    x1 = rmsnorm(x)                                   # (BB, S, D) f32
    x1f = x1.reshape(M, D)
    x1_bf = x1f.astype(jnp.bfloat16)

    # ---- fused Q/K/V projection: one (M, D) @ (D, 3*H*D) MXU op ----
    qkv = jnp.dot(x1_bf, wqkv_ref[...], preferred_element_type=jnp.float32)  # (M, 3*H*D)
    q_all = qkv[:, :HD]
    k_all = qkv[:, HD:2 * HD]
    v_all = qkv[:, 2 * HD:]

    # ---- RoPE tables: expand (S, D) -> (M, H*D) in-kernel (only (S, D) bytes DMA'd) ----
    def expand(t):
        th = jnp.concatenate([t] * H, axis=-1) if H > 1 else t      # (S, H*D)
        return jnp.concatenate([th] * BB, axis=0) if BB > 1 else th  # (M, H*D)

    cos_f = expand(cos_ref[...])
    sina_f = expand(sina_ref[...])
    sinb_f = expand(sinb_ref[...])

    def rotate(t):
        # rotated[:, 2i]   =  cos*t[:, 2i]   + sin*t[:, 2i+1]
        # rotated[:, 2i+1] = -sin*t[:, 2i]   + cos*t[:, 2i+1]
        # sin_a is zero on odd lanes and sin_b zero on even lanes, so the lane-0 /
        # lane-(HD-1) wrap of the rolls contributes nothing.  D is even, so (2i, 2i+1)
        # pairs never straddle a head boundary — keep this invariant.
        return (t * cos_f
                + pltpu.roll(t, HD - 1, 1) * sina_f    # t[:, j+1] at lane j
                + pltpu.roll(t, 1, 1) * sinb_f)        # t[:, j-1] at lane j

    inv_sqrt_d = jnp.float32(1.0 / np.sqrt(D))
    # fold the attention scale into q once (instead of per-head over (BB, S, S) scores);
    # cast q/k/v to bf16 once, before the head loop.
    q_bf = (rotate(q_all) * inv_sqrt_d).astype(jnp.bfloat16).reshape(BB, S, HD)
    k_bf = rotate(k_all).astype(jnp.bfloat16).reshape(BB, S, HD)
    v_bf = v_all.astype(jnp.bfloat16).reshape(BB, S, HD)

    # ---- causal attention, batched over the batch block per head ----
    row = jax.lax.broadcasted_iota(jnp.int32, (BB, S, S), 1)
    col = jax.lax.broadcasted_iota(jnp.int32, (BB, S, S), 2)
    causal = col <= row

    head_outs = []
    for h in range(H):                                 # static unroll (H small)
        sl = slice(h * D, (h + 1) * D)
        qh = q_bf[:, :, sl]
        kh = k_bf[:, :, sl]
        vh = v_bf[:, :, sl]

        s = jnp.einsum("bqd,bkd->bqk", qh, kh,
                       preferred_element_type=jnp.float32)   # scale already folded into q
        s = jnp.where(causal, s, -jnp.inf)
        s = s - jnp.max(s, axis=-1, keepdims=True)
        p = jnp.exp(s)
        p = p * pl.reciprocal(jnp.sum(p, axis=-1, keepdims=True), approx=True)

        ho = jnp.einsum("bqk,bkd->bqd", p.astype(jnp.bfloat16), vh,
                        preferred_element_type=jnp.float32)
        head_outs.append(ho.astype(jnp.bfloat16).reshape(M, D))

    attn_cat = jnp.concatenate(head_outs, axis=-1)     # (M, H*D) bf16
    # keep the fused K=H*D matmul (fills the 256-deep MXU on v6e/v7x)
    attn_out = jnp.dot(attn_cat, wo_ref[...],
                       preferred_element_type=jnp.float32) + bo_ref[...]
    # TODO(synk): attention dropout_p=0.1 and the post-projection nn.Dropout(0.1) are
    #             training-mode stochastic ops; eval-mode identity here.

    x2 = x1f + attn_out                                # (M, D)

    # ---- RMSNorm #2 (same scale parameter) ----
    x3 = rmsnorm(x2.reshape(BB, S, D))
    x3f = x3.reshape(M, D)

    # ---- feedforward: Linear(d, d) then SwiGLU (gate & linear fused to one matmul) ----
    h1 = jnp.dot(x3f.astype(jnp.bfloat16), w1_ref[...],
                 preferred_element_type=jnp.float32) + b1_ref[...]
    gl = jnp.dot(h1.astype(jnp.bfloat16), wgl_ref[...],
                 preferred_element_type=jnp.float32) + bgl_ref[...]
    g = gl[:, :D]
    lin = gl[:, D:]
    beta = beta_ref[0]
    ff = (g * jax.nn.sigmoid(beta * g)) * lin

    out_ref[...] = (x3f + ff).reshape(BB, S, D)


# ----------------------------------------------------------------------------
# Wrapper
# ----------------------------------------------------------------------------
def llama_block(x, params, *, batch_block=None):
    """batch_block=None folds the whole batch into one grid step (correct default for
    small configs on any chip).  Only pass a smaller batch_block to shard across v7x's
    two TensorCores (or to restore pipelining) when BB*S per step is >= ~256 rows;
    otherwise the per-step overhead / duplicated weight DMA outweighs the gain."""
    B, S, D = x.shape
    H = params["wqkv"].shape[1] // (3 * D)
    HD = H * D
    BB = B if batch_block is None else batch_block
    assert B % BB == 0, "batch_block must divide batch"
    grid = (B // BB,)

    # advisory cost estimate for the XLA scheduler
    flops = int(2 * B * S * D * (3 * HD)        # qkv
                + 4 * B * H * S * S * D         # scores + AV
                + 2 * B * S * HD * D            # out proj
                + 2 * B * S * D * D             # ff linear
                + 2 * B * S * D * (2 * D))      # gate + linear
    transcendentals = int(B * H * S * S + B * S * D + 2 * B)
    tensors = (x, params["scale"], params["cos"], params["sina"], params["sinb"],
               params["wqkv"], params["wo"], params["bo"], params["w1"], params["b1"],
               params["wgl"], params["bgl"], params["beta"])
    bytes_accessed = int(sum(t.size * t.dtype.itemsize for t in tensors)
                         + x.size * x.dtype.itemsize)

    full2 = lambda b: (0, 0)
    # Note: weights have constant index maps; when the grid has >1 step at larger scales,
    # single-buffer them (pipeline_mode=pl.Buffered(1)) and set vmem_limit_bytes
    # explicitly — negligible at this config (grid=(1,)).
    in_specs = [
        pl.BlockSpec((BB, S, D), lambda b: (b, 0, 0)),      # x
        pl.BlockSpec((S, D), full2),                        # scale
        pl.BlockSpec((S, D), full2),                        # cos
        pl.BlockSpec((S, D), full2),                        # sin_a (sign-folded, even lanes)
        pl.BlockSpec((S, D), full2),                        # sin_b (sign-folded, odd lanes)
        pl.BlockSpec((D, 3 * HD), full2),                   # wqkv (bf16)
        pl.BlockSpec((HD, D), full2),                       # wo   (bf16)
        pl.BlockSpec((1, D), full2),                        # bo
        pl.BlockSpec((D, D), full2),                        # w1   (bf16)
        pl.BlockSpec((1, D), full2),                        # b1
        pl.BlockSpec((D, 2 * D), full2),                    # wgl  (bf16)
        pl.BlockSpec((1, 2 * D), full2),                    # bgl
        pl.BlockSpec(memory_space=pltpu.MemorySpace.SMEM),  # beta (scalar)
    ]

    return pl.pallas_call(
        llama_block_kernel,
        out_shape=jax.ShapeDtypeStruct((B, S, D), jnp.float32),
        grid_spec=pltpu.PrefetchScalarGridSpec(
            num_scalar_prefetch=0,
            grid=grid,
            in_specs=in_specs,
            out_specs=pl.BlockSpec((BB, S, D), lambda b: (b, 0, 0)),
        ),
        compiler_params=pltpu.CompilerParams(
            dimension_semantics=("parallel",),
        ),
        cost_estimate=pl.CostEstimate(flops=flops,
                                      transcendentals=transcendentals,
                                      bytes_accessed=bytes_accessed),
    )(
        x, params["scale"], params["cos"], params["sina"], params["sinb"],
        params["wqkv"], params["wo"], params["bo"],
        params["w1"], params["b1"], params["wgl"], params["bgl"],
        params["beta"],
    )


# ----------------------------------------------------------------------------
# Parameter / table construction (deterministic, in-script)
# ----------------------------------------------------------------------------
def make_rotary_tables(S, D):
    """cos table plus sign-folded sin tables so the kernel RoPE is
    t*cos + roll(t,-1)*sin_a + roll(t,+1)*sin_b (no iota/where/negate)."""
    i = np.arange(D // 2, dtype=np.float64)
    theta = 10000.0 ** (-2.0 * (i - 1) / D)           # (i-1) matches the reference formula
    ang = np.arange(S, dtype=np.float64)[:, None] * theta[None, :]   # (S, D/2)
    cos = np.cos(ang)
    sin = np.sin(ang)
    cos_t = np.repeat(cos, 2, axis=1)                 # (S, D)
    sina = np.zeros((S, D), dtype=np.float64)
    sinb = np.zeros((S, D), dtype=np.float64)
    sina[:, 0::2] = sin                               # even lanes: +sin  (pairs with t[j+1])
    sinb[:, 1::2] = -sin                              # odd  lanes: -sin  (pairs with t[j-1])
    return (jnp.asarray(cos_t, jnp.float32),
            jnp.asarray(sina, jnp.float32),
            jnp.asarray(sinb, jnp.float32))


def build_rotary_matrix(S, D):
    # full (S, D, D) rotation matrices, exactly as in the torch reference
    R = np.zeros((S, D, D), dtype=np.float64)
    for pos in range(S):
        for i in range(D // 2):
            theta = 10000.0 ** (-2.0 * (i - 1) / D)
            m_theta = pos * theta
            R[pos, 2 * i, 2 * i] = np.cos(m_theta)
            R[pos, 2 * i, 2 * i + 1] = -np.sin(m_theta)
            R[pos, 2 * i + 1, 2 * i] = np.sin(m_theta)
            R[pos, 2 * i + 1, 2 * i + 1] = np.cos(m_theta)
    return R.astype(np.float32)


def init_params(key, S, D, H):
    HD = H * D
    ks = jax.random.split(key, 8)
    bd = 1.0 / np.sqrt(D)
    bo_bd = 1.0 / np.sqrt(HD)
    u = lambda k, shape, b: jax.random.uniform(k, shape, jnp.float32, -b, b)
    cos_t, sina_t, sinb_t = make_rotary_tables(S, D)
    return {
        "scale": jnp.ones((S, D), jnp.float32),        # RMSNorm scale init = ones
        "cos": cos_t, "sina": sina_t, "sinb": sinb_t,
        # weights stored in bf16 (MXU-native); biases / tables stay f32
        "wqkv": u(ks[0], (D, 3 * HD), bd).astype(jnp.bfloat16),
        "wo":   u(ks[1], (HD, D), bo_bd).astype(jnp.bfloat16),
        "bo":   u(ks[2], (1, D), bo_bd),
        "w1":   u(ks[3], (D, D), bd).astype(jnp.bfloat16),
        "b1":   u(ks[4], (1, D), bd),
        "wgl":  u(ks[5], (D, 2 * D), bd).astype(jnp.bfloat16),
        "bgl":  u(ks[6], (1, 2 * D), bd),
        "beta": jnp.ones((1,), jnp.float32),           # SwiGLU beta init = ones
    }


# ----------------------------------------------------------------------------
# Pure-JAX f32 reference (module math, HIGHEST precision, explicit R matrices)
# ----------------------------------------------------------------------------
def reference_llama_block(x, params, H):
    B, S, D = x.shape
    HD = H * D
    hp = jax.lax.Precision.HIGHEST

    wqkv = params["wqkv"].astype(jnp.float32)
    wq_all, wk_all, wv_all = wqkv[:, :HD], wqkv[:, HD:2 * HD], wqkv[:, 2 * HD:]
    wo = params["wo"].astype(jnp.float32)
    w1 = params["w1"].astype(jnp.float32)
    wgl = params["wgl"].astype(jnp.float32)
    wg, wl = wgl[:, :D], wgl[:, D:]
    bo, b1 = params["bo"], params["b1"]
    bg, bl = params["bgl"][:, :D], params["bgl"][:, D:]
    scale = params["scale"]
    beta = params["beta"][0]
    R = jnp.asarray(build_rotary_matrix(S, D))         # (S, D, D)

    def rms(v):
        ff = jnp.sqrt(jnp.sum(v * v, axis=(1, 2), keepdims=True) / (S * D))
        return scale[None] * (v / ff)

    causal = jnp.asarray(np.tril(np.ones((S, S), dtype=bool)))

    x1 = rms(x)
    heads = []
    for h in range(H):
        q = jnp.einsum("bsd,de->bse", x1, wq_all[:, h * D:(h + 1) * D], precision=hp)
        k = jnp.einsum("bsd,de->bse", x1, wk_all[:, h * D:(h + 1) * D], precision=hp)
        v = jnp.einsum("bsd,de->bse", x1, wv_all[:, h * D:(h + 1) * D], precision=hp)
        q = jnp.einsum("bsd,sde->bse", q, R, precision=hp)   # q[b,s] @ R[s]
        k = jnp.einsum("bsd,sde->bse", k, R, precision=hp)
        s = jnp.einsum("bqd,bkd->bqk", q, k, precision=hp) / np.sqrt(D)
        s = jnp.where(causal[None], s, -jnp.inf)
        w = jax.nn.softmax(s, axis=-1)
        heads.append(jnp.einsum("bqk,bkd->bqd", w, v, precision=hp))
    cat = jnp.concatenate(heads, axis=-1)                    # (B, S, H*D)
    attn = jnp.einsum("bsk,kd->bsd", cat, wo, precision=hp) + bo[0]

    x2 = x1 + attn
    x3 = rms(x2)
    h1 = jnp.einsum("bsd,de->bse", x3, w1, precision=hp) + b1[0]
    g = jnp.einsum("bsd,de->bse", h1, wg, precision=hp) + bg[0]
    lin = jnp.einsum("bsd,de->bse", h1, wl, precision=hp) + bl[0]
    ff = (g * jax.nn.sigmoid(beta * g)) * lin
    return x3 + ff


if __name__ == "__main__":
    # small, TPU-friendly config: batch=2, context_window=16, d_model=128, n_heads=2
    B, S, D, H = 2, 16, 128, 2

    key = jax.random.PRNGKey(0)
    kx, kp = jax.random.split(key)
    x = jax.random.normal(kx, (B, S, D), jnp.float32)
    params = init_params(kp, S, D, H)

    out = jax.block_until_ready(llama_block(x, params))
    ref = jax.block_until_ready(reference_llama_block(x, params, H))

    assert out.shape == (B, S, D)
    assert bool(jnp.all(jnp.isfinite(out)))
    max_diff = float(jnp.max(jnp.abs(out - ref)))
    # kernel uses bf16 MXU inputs (f32 accumulate) + approx reciprocal vs. the f32
    # HIGHEST-precision reference
    assert bool(jnp.allclose(out, ref, atol=3e-2, rtol=3e-2)), (
        "max abs diff = %s" % max_diff)

    print("KERNEL_OK")
</pallas_src>

<mosaic_0001>
module attributes {stable_mosaic.version = 11 : i64} {
  func.func @llama_block_kernel(%arg0: i32, %arg1: memref<2x16x128xf32, #tpu.memory_space<vmem>>, %arg2: memref<16x128xf32, #tpu.memory_space<vmem>>, %arg3: memref<16x128xf32, #tpu.memory_space<vmem>>, %arg4: memref<16x128xf32, #tpu.memory_space<vmem>>, %arg5: memref<16x128xf32, #tpu.memory_space<vmem>>, %arg6: memref<128x768xbf16, #tpu.memory_space<vmem>>, %arg7: memref<256x128xbf16, #tpu.memory_space<vmem>>, %arg8: memref<1x128xf32, #tpu.memory_space<vmem>>, %arg9: memref<128x128xbf16, #tpu.memory_space<vmem>>, %arg10: memref<1x128xf32, #tpu.memory_space<vmem>>, %arg11: memref<128x256xbf16, #tpu.memory_space<vmem>>, %arg12: memref<1x256xf32, #tpu.memory_space<vmem>>, %arg13: memref<1xf32, #tpu.memory_space<smem>>, %arg14: memref<2x16x128xf32, #tpu.memory_space<vmem>>) attributes {dimension_semantics = [#tpu.dimension_semantics<parallel>], iteration_bounds = array<i64: 1>, scalar_prefetch = 0 : i64, scratch_operands = 0 : i64, tpu.core_type = #tpu.core_type<tc>, window_params = [{transform_indices = @transform_0, window_bounds = array<i64: 2, 16, 128>}, {pipeline_mode = #tpu.pipeline_mode<synchronous>, transform_indices = @transform_1, window_bounds = array<i64: 16, 128>}, {pipeline_mode = #tpu.pipeline_mode<synchronous>, transform_indices = @transform_2, window_bounds = array<i64: 16, 128>}, {pipeline_mode = #tpu.pipeline_mode<synchronous>, transform_indices = @transform_3, window_bounds = array<i64: 16, 128>}, {pipeline_mode = #tpu.pipeline_mode<synchronous>, transform_indices = @transform_4, window_bounds = array<i64: 16, 128>}, {pipeline_mode = #tpu.pipeline_mode<synchronous>, transform_indices = @transform_5, window_bounds = array<i64: 128, 768>}, {pipeline_mode = #tpu.pipeline_mode<synchronous>, transform_indices = @transform_6, window_bounds = array<i64: 256, 128>}, {pipeline_mode = #tpu.pipeline_mode<synchronous>, transform_indices = @transform_7, window_bounds = array<i64: 1, 128>}, {pipeline_mode = #tpu.pipeline_mode<synchronous>, transform_indices = @transform_8, window_bounds = array<i64: 128, 128>}, {pipeline_mode = #tpu.pipeline_mode<synchronous>, transform_indices = @transform_9, window_bounds = array<i64: 1, 128>}, {pipeline_mode = #tpu.pipeline_mode<synchronous>, transform_indices = @transform_10, window_bounds = array<i64: 128, 256>}, {pipeline_mode = #tpu.pipeline_mode<synchronous>, transform_indices = @transform_11, window_bounds = array<i64: 1, 256>}, {transform_indices = @transform_12, window_bounds = array<i64: 1>}, {transform_indices = @transform_13, window_bounds = array<i64: 2, 16, 128>}]} {
    %c0 = arith.constant 0 : index
    %c0_0 = arith.constant 0 : index
    %c0_1 = arith.constant 0 : index
    %0 = vector.load %arg1[%c0, %c0_0, %c0_1] : memref<2x16x128xf32, #tpu.memory_space<vmem>>, vector<2x16x128xf32>
    %c0_2 = arith.constant 0 : index
    %c0_3 = arith.constant 0 : index
    %1 = vector.load %arg2[%c0_2, %c0_3] : memref<16x128xf32, #tpu.memory_space<vmem>>, vector<16x128xf32>
    %2 = arith.mulf %0, %0 : vector<2x16x128xf32>
    %cst = arith.constant dense<0.000000e+00> : vector<2x16xf32>
    %3 = vector.multi_reduction <add>, %2, %cst [2] : vector<2x16x128xf32> to vector<2x16xf32>
    %4 = vector.shape_cast %3 : vector<2x16xf32> to vector<2x16x1xf32>
    %cst_4 = arith.constant dense<0.000000e+00> : vector<2x1xf32>
    %5 = vector.multi_reduction <add>, %4, %cst_4 [1] : vector<2x16x1xf32> to vector<2x1xf32>
    %6 = vector.shape_cast %5 : vector<2x1xf32> to vector<2x1x1xf32>
    %cst_5 = arith.constant 4.8828125E-4 : f32
    %7 = vector.broadcast %cst_5 : f32 to vector<2x1x1xf32>
    %8 = arith.mulf %6, %7 : vector<2x1x1xf32>
    %9 = math.rsqrt %8 : vector<2x1x1xf32>
    %10 = vector.shape_cast %1 : vector<16x128xf32> to vector<1x16x128xf32>
    %11 = vector.broadcast %9 : vector<2x1x1xf32> to vector<2x16x128xf32>
    %12 = arith.mulf %0, %11 : vector<2x16x128xf32>
    %13 = vector.broadcast %10 : vector<1x16x128xf32> to vector<2x16x128xf32>
    %14 = arith.mulf %13, %12 : vector<2x16x128xf32>
    %15 = vector.shape_cast %14 : vector<2x16x128xf32> to vector<32x128xf32>
    %16 = arith.truncf %15 : vector<32x128xf32> to vector<32x128xbf16>
    %c0_6 = arith.constant 0 : index
    %c0_7 = arith.constant 0 : index
    %17 = vector.load %arg6[%c0_6, %c0_7] : memref<128x768xbf16, #tpu.memory_space<vmem>>, vector<128x768xbf16>
    %cst_8 = arith.constant dense<0.000000e+00> : vector<32x768xf32>
    %18 = tpu.matmul %16, %17, %cst_8 {dimension_numbers = #tpu.dot_dimension_numbers<[1], [0], [0], [1], [0, 0, 1, 1], [], []>} : vector<32x128xbf16>, vector<128x768xbf16>, vector<32x768xf32> -> vector<32x768xf32>
    %19 = vector.extract_strided_slice %18 {offsets = [0, 0], sizes = [32, 256], strides = [1, 1]} : vector<32x768xf32> to vector<32x256xf32>
    %20 = vector.extract_strided_slice %18 {offsets = [0, 256], sizes = [32, 256], strides = [1, 1]} : vector<32x768xf32> to vector<32x256xf32>
    %21 = vector.extract_strided_slice %18 {offsets = [0, 512], sizes = [32, 256], strides = [1, 1]} : vector<32x768xf32> to vector<32x256xf32>
    %c0_9 = arith.constant 0 : index
    %c0_10 = arith.constant 0 : index
    %22 = vector.load %arg3[%c0_9, %c0_10] : memref<16x128xf32, #tpu.memory_space<vmem>>, vector<16x128xf32>
    %23 = tpu.concatenate %22, %22 in 1 : vector<16x128xf32>, vector<16x128xf32> -> vector<16x256xf32>
    %24 = tpu.concatenate %23, %23 in 0 : vector<16x256xf32>, vector<16x256xf32> -> vector<32x256xf32>
    %c0_11 = arith.constant 0 : index
    %c0_12 = arith.constant 0 : index
    %25 = vector.load %arg4[%c0_11, %c0_12] : memref<16x128xf32, #tpu.memory_space<vmem>>, vector<16x128xf32>
    %26 = tpu.concatenate %25, %25 in 1 : vector<16x128xf32>, vector<16x128xf32> -> vector<16x256xf32>
    %27 = tpu.concatenate %26, %26 in 0 : vector<16x256xf32>, vector<16x256xf32> -> vector<32x256xf32>
    %c0_13 = arith.constant 0 : index
    %c0_14 = arith.constant 0 : index
    %28 = vector.load %arg5[%c0_13, %c0_14] : memref<16x128xf32, #tpu.memory_space<vmem>>, vector<16x128xf32>
    %29 = tpu.concatenate %28, %28 in 1 : vector<16x128xf32>, vector<16x128xf32> -> vector<16x256xf32>
    %30 = tpu.concatenate %29, %29 in 0 : vector<16x256xf32>, vector<16x256xf32> -> vector<32x256xf32>
    %31 = arith.mulf %19, %24 : vector<32x256xf32>
    %c255_i32 = arith.constant 255 : i32
    %32 = tpu.dynamic_rotate %19 by %c255_i32 dim 1 : vector<32x256xf32>, i32 -> vector<32x256xf32>
    %33 = arith.mulf %32, %27 : vector<32x256xf32>
    %34 = arith.addf %31, %33 : vector<32x256xf32>
    %c1_i32 = arith.constant 1 : i32
    %35 = tpu.dynamic_rotate %19 by %c1_i32 dim 1 : vector<32x256xf32>, i32 -> vector<32x256xf32>
    %36 = arith.mulf %35, %30 : vector<32x256xf32>
    %37 = arith.addf %34, %36 : vector<32x256xf32>
    %cst_15 = arith.constant 0.0883883461 : f32
    %38 = vector.broadcast %cst_15 : f32 to vector<32x256xf32>
    %39 = arith.mulf %37, %38 : vector<32x256xf32>
    %40 = arith.truncf %39 : vector<32x256xf32> to vector<32x256xbf16>
    %41 = vector.shape_cast %40 : vector<32x256xbf16> to vector<2x16x256xbf16>
    %42 = arith.mulf %20, %24 : vector<32x256xf32>
    %c255_i32_16 = arith.constant 255 : i32
    %43 = tpu.dynamic_rotate %20 by %c255_i32_16 dim 1 : vector<32x256xf32>, i32 -> vector<32x256xf32>
    %44 = arith.mulf %43, %27 : vector<32x256xf32>
    %45 = arith.addf %42, %44 : vector<32x256xf32>
    %c1_i32_17 = arith.constant 1 : i32
    %46 = tpu.dynamic_rotate %20 by %c1_i32_17 dim 1 : vector<32x256xf32>, i32 -> vector<32x256xf32>
    %47 = arith.mulf %46, %30 : vector<32x256xf32>
    %48 = arith.addf %45, %47 : vector<32x256xf32>
    %49 = arith.truncf %48 : vector<32x256xf32> to vector<32x256xbf16>
    %50 = vector.shape_cast %49 : vector<32x256xbf16> to vector<2x16x256xbf16>
    %51 = arith.truncf %21 : vector<32x256xf32> to vector<32x256xbf16>
    %52 = vector.shape_cast %51 : vector<32x256xbf16> to vector<2x16x256xbf16>
    %53 = tpu.iota {dimensions = array<i32: 1>} : vector<2x16x16xi32>
    %54 = tpu.iota {dimensions = array<i32: 2>} : vector<2x16x16xi32>
    %55 = arith.cmpi sle, %54, %53 : vector<2x16x16xi32>
    %56 = vector.extract_strided_slice %41 {offsets = [0, 0, 0], sizes = [2, 16, 128], strides = [1, 1, 1]} : vector<2x16x256xbf16> to vector<2x16x128xbf16>
    %57 = vector.extract_strided_slice %50 {offsets = [0, 0, 0], sizes = [2, 16, 128], strides = [1, 1, 1]} : vector<2x16x256xbf16> to vector<2x16x128xbf16>
    %58 = vector.extract_strided_slice %52 {offsets = [0, 0, 0], sizes = [2, 16, 128], strides = [1, 1, 1]} : vector<2x16x256xbf16> to vector<2x16x128xbf16>
    "tpu.trace_start"() <{level = 10 : i32, message = "bqd,bkd->bqk"}> : () -> ()
    %cst_18 = arith.constant dense<0.000000e+00> : vector<2x16x16xf32>
    %59 = tpu.matmul %56, %57, %cst_18 {dimension_numbers = #tpu.dot_dimension_numbers<[2], [2], [1], [1], [0, 0, 0, 1, 1, 1], [0], [0]>} : vector<2x16x128xbf16>, vector<2x16x128xbf16>, vector<2x16x16xf32> -> vector<2x16x16xf32>
    %cst_19 = arith.constant 0xFF800000 : f32
    "tpu.trace_stop"() : () -> ()
    %60 = vector.broadcast %cst_19 : f32 to vector<2x16x16xf32>
    %61 = arith.select %55, %59, %60 : vector<2x16x16xi1>, vector<2x16x16xf32>
    %cst_20 = arith.constant dense<0xFF800000> : vector<2x16xf32>
    %62 = vector.multi_reduction <maximumf>, %61, %cst_20 [2] : vector<2x16x16xf32> to vector<2x16xf32>
    %63 = vector.shape_cast %62 : vector<2x16xf32> to vector<2x16x1xf32>
    %64 = vector.broadcast %63 : vector<2x16x1xf32> to vector<2x16x16xf32>
    %65 = arith.subf %61, %64 : vector<2x16x16xf32>
    %66 = math.exp %65 : vector<2x16x16xf32>
    %cst_21 = arith.constant dense<0.000000e+00> : vector<2x16xf32>
    %67 = vector.multi_reduction <add>, %66, %cst_21 [2] : vector<2x16x16xf32> to vector<2x16xf32>
    %68 = vector.shape_cast %67 : vector<2x16xf32> to vector<2x16x1xf32>
    %69 = tpu.reciprocal %68 {approx = true} : vector<2x16x1xf32> -> vector<2x16x1xf32>
    %70 = vector.broadcast %69 : vector<2x16x1xf32> to vector<2x16x16xf32>
    %71 = arith.mulf %66, %70 : vector<2x16x16xf32>
    %72 = arith.truncf %71 : vector<2x16x16xf32> to vector<2x16x16xbf16>
    "tpu.trace_start"() <{level = 10 : i32, message = "bqk,bkd->bqd"}> : () -> ()
    %cst_22 = arith.constant dense<0.000000e+00> : vector<2x16x128xf32>
    %73 = tpu.matmul %72, %58, %cst_22 {dimension_numbers = #tpu.dot_dimension_numbers<[2], [1], [1], [2], [0, 0, 0, 1, 1, 2], [0], [0]>} : vector<2x16x16xbf16>, vector<2x16x128xbf16>, vector<2x16x128xf32> -> vector<2x16x128xf32>
    "tpu.trace_stop"() : () -> ()
    %74 = arith.truncf %73 : vector<2x16x128xf32> to vector<2x16x128xbf16>
    %75 = vector.shape_cast %74 : vector<2x16x128xbf16> to vector<32x128xbf16>
    %76 = vector.extract_strided_slice %41 {offsets = [0, 0, 128], sizes = [2, 16, 128], strides = [1, 1, 1]} : vector<2x16x256xbf16> to vector<2x16x128xbf16>
    %77 = vector.extract_strided_slice %50 {offsets = [0, 0, 128], sizes = [2, 16, 128], strides = [1, 1, 1]} : vector<2x16x256xbf16> to vector<2x16x128xbf16>
    %78 = vector.extract_strided_slice %52 {offsets = [0, 0, 128], sizes = [2, 16, 128], strides = [1, 1, 1]} : vector<2x16x256xbf16> to vector<2x16x128xbf16>
    "tpu.trace_start"() <{level = 10 : i32, message = "bqd,bkd->bqk"}> : () -> ()
    %cst_23 = arith.constant dense<0.000000e+00> : vector<2x16x16xf32>
    %79 = tpu.matmul %76, %77, %cst_23 {dimension_numbers = #tpu.dot_dimension_numbers<[2], [2], [1], [1], [0, 0, 0, 1, 1, 1], [0], [0]>} : vector<2x16x128xbf16>, vector<2x16x128xbf16>, vector<2x16x16xf32> -> vector<2x16x16xf32>
    %cst_24 = arith.constant 0xFF800000 : f32
    "tpu.trace_stop"() : () -> ()
    %80 = vector.broadcast %cst_24 : f32 to vector<2x16x16xf32>
    %81 = arith.select %55, %79, %80 : vector<2x16x16xi1>, vector<2x16x16xf32>
    %cst_25 = arith.constant dense<0xFF800000> : vector<2x16xf32>
    %82 = vector.multi_reduction <maximumf>, %81, %cst_25 [2] : vector<2x16x16xf32> to vector<2x16xf32>
    %83 = vector.shape_cast %82 : vector<2x16xf32> to vector<2x16x1xf32>
    %84 = vector.broadcast %83 : vector<2x16x1xf32> to vector<2x16x16xf32>
    %85 = arith.subf %81, %84 : vector<2x16x16xf32>
    %86 = math.exp %85 : vector<2x16x16xf32>
    %cst_26 = arith.constant dense<0.000000e+00> : vector<2x16xf32>
    %87 = vector.multi_reduction <add>, %86, %cst_26 [2] : vector<2x16x16xf32> to vector<2x16xf32>
    %88 = vector.shape_cast %87 : vector<2x16xf32> to vector<2x16x1xf32>
    %89 = tpu.reciprocal %88 {approx = true} : vector<2x16x1xf32> -> vector<2x16x1xf32>
    %90 = vector.broadcast %89 : vector<2x16x1xf32> to vector<2x16x16xf32>
    %91 = arith.mulf %86, %90 : vector<2x16x16xf32>
    %92 = arith.truncf %91 : vector<2x16x16xf32> to vector<2x16x16xbf16>
    "tpu.trace_start"() <{level = 10 : i32, message = "bqk,bkd->bqd"}> : () -> ()
    %cst_27 = arith.constant dense<0.000000e+00> : vector<2x16x128xf32>
    %93 = tpu.matmul %92, %78, %cst_27 {dimension_numbers = #tpu.dot_dimension_numbers<[2], [1], [1], [2], [0, 0, 0, 1, 1, 2], [0], [0]>} : vector<2x16x16xbf16>, vector<2x16x128xbf16>, vector<2x16x128xf32> -> vector<2x16x128xf32>
    "tpu.trace_stop"() : () -> ()
    %94 = arith.truncf %93 : vector<2x16x128xf32> to vector<2x16x128xbf16>
    %95 = vector.shape_cast %94 : vector<2x16x128xbf16> to vector<32x128xbf16>
    %96 = tpu.concatenate %75, %95 in 1 : vector<32x128xbf16>, vector<32x128xbf16> -> vector<32x256xbf16>
    %c0_28 = arith.constant 0 : index
    %c0_29 = arith.constant 0 : index
    %97 = vector.load %arg7[%c0_28, %c0_29] : memref<256x128xbf16, #tpu.memory_space<vmem>>, vector<256x128xbf16>
    %cst_30 = arith.constant dense<0.000000e+00> : vector<32x128xf32>
    %98 = tpu.matmul %96, %97, %cst_30 {dimension_numbers = #tpu.dot_dimension_numbers<[1], [0], [0], [1], [0, 0, 1, 1], [], []>} : vector<32x256xbf16>, vector<256x128xbf16>, vector<32x128xf32> -> vector<32x128xf32>
    %c0_31 = arith.constant 0 : index
    %c0_32 = arith.constant 0 : index
    %99 = vector.load %arg8[%c0_31, %c0_32] : memref<1x128xf32, #tpu.memory_space<vmem>>, vector<1x128xf32>
    %100 = vector.broadcast %99 : vector<1x128xf32> to vector<32x128xf32>
    %101 = arith.addf %98, %100 : vector<32x128xf32>
    %102 = arith.addf %15, %101 : vector<32x128xf32>
    %103 = vector.shape_cast %102 : vector<32x128xf32> to vector<2x16x128xf32>
    %104 = arith.mulf %103, %103 : vector<2x16x128xf32>
    %cst_33 = arith.constant dense<0.000000e+00> : vector<2x16xf32>
    %105 = vector.multi_reduction <add>, %104, %cst_33 [2] : vector<2x16x128xf32> to vector<2x16xf32>
    %106 = vector.shape_cast %105 : vector<2x16xf32> to vector<2x16x1xf32>
    %cst_34 = arith.constant dense<0.000000e+00> : vector<2x1xf32>
    %107 = vector.multi_reduction <add>, %106, %cst_34 [1] : vector<2x16x1xf32> to vector<2x1xf32>
    %108 = vector.shape_cast %107 : vector<2x1xf32> to vector<2x1x1xf32>
    %cst_35 = arith.constant 4.8828125E-4 : f32
    %109 = vector.broadcast %cst_35 : f32 to vector<2x1x1xf32>
    %110 = arith.mulf %108, %109 : vector<2x1x1xf32>
    %111 = math.rsqrt %110 : vector<2x1x1xf32>
    %112 = vector.shape_cast %1 : vector<16x128xf32> to vector<1x16x128xf32>
    %113 = vector.broadcast %111 : vector<2x1x1xf32> to vector<2x16x128xf32>
    %114 = arith.mulf %103, %113 : vector<2x16x128xf32>
    %115 = vector.broadcast %112 : vector<1x16x128xf32> to vector<2x16x128xf32>
    %116 = arith.mulf %115, %114 : vector<2x16x128xf32>
    %117 = vector.shape_cast %116 : vector<2x16x128xf32> to vector<32x128xf32>
    %118 = arith.truncf %117 : vector<32x128xf32> to vector<32x128xbf16>
    %c0_36 = arith.constant 0 : index
    %c0_37 = arith.constant 0 : index
    %119 = vector.load %arg9[%c0_36, %c0_37] : memref<128x128xbf16, #tpu.memory_space<vmem>>, vector<128x128xbf16>
    %cst_38 = arith.constant dense<0.000000e+00> : vector<32x128xf32>
    %120 = tpu.matmul %118, %119, %cst_38 {dimension_numbers = #tpu.dot_dimension_numbers<[1], [0], [0], [1], [0, 0, 1, 1], [], []>} : vector<32x128xbf16>, vector<128x128xbf16>, vector<32x128xf32> -> vector<32x128xf32>
    %c0_39 = arith.constant 0 : index
    %c0_40 = arith.constant 0 : index
    %121 = vector.load %arg10[%c0_39, %c0_40] : memref<1x128xf32, #tpu.memory_space<vmem>>, vector<1x128xf32>
    %122 = vector.broadcast %121 : vector<1x128xf32> to vector<32x128xf32>
    %123 = arith.addf %120, %122 : vector<32x128xf32>
    %124 = arith.truncf %123 : vector<32x128xf32> to vector<32x128xbf16>
    %c0_41 = arith.constant 0 : index
    %c0_42 = arith.constant 0 : index
    %125 = vector.load %arg11[%c0_41, %c0_42] : memref<128x256xbf16, #tpu.memory_space<vmem>>, vector<128x256xbf16>
    %cst_43 = arith.constant dense<0.000000e+00> : vector<32x256xf32>
    %126 = tpu.matmul %124, %125, %cst_43 {dimension_numbers = #tpu.dot_dimension_numbers<[1], [0], [0], [1], [0, 0, 1, 1], [], []>} : vector<32x128xbf16>, vector<128x256xbf16>, vector<32x256xf32> -> vector<32x256xf32>
    %c0_44 = arith.constant 0 : index
    %c0_45 = arith.constant 0 : index
    %127 = vector.load %arg12[%c0_44, %c0_45] : memref<1x256xf32, #tpu.memory_space<vmem>>, vector<1x256xf32>
    %128 = vector.broadcast %127 : vector<1x256xf32> to vector<32x256xf32>
    %129 = arith.addf %126, %128 : vector<32x256xf32>
    %130 = vector.extract_strided_slice %129 {offsets = [0, 0], sizes = [32, 128], strides = [1, 1]} : vector<32x256xf32> to vector<32x128xf32>
    %131 = vector.extract_strided_slice %129 {offsets = [0, 128], sizes = [32, 128], strides = [1, 1]} : vector<32x256xf32> to vector<32x128xf32>
    %c0_46 = arith.constant 0 : index
    %132 = memref.load %arg13[%c0_46] : memref<1xf32, #tpu.memory_space<smem>>
    %133 = vector.broadcast %132 : f32 to vector<32x128xf32>
    %134 = arith.mulf %133, %130 : vector<32x128xf32>
    %135 = arith.negf %134 : vector<32x128xf32>
    %136 = math.exp %135 : vector<32x128xf32>
    %cst_47 = arith.constant 1.000000e+00 : f32
    %137 = vector.broadcast %cst_47 : f32 to vector<32x128xf32>
    %138 = arith.addf %137, %136 : vector<32x128xf32>
    %139 = arith.divf %137, %138 : vector<32x128xf32>
    %140 = arith.mulf %130, %139 : vector<32x128xf32>
    %141 = arith.mulf %140, %131 : vector<32x128xf32>
    %142 = arith.addf %117, %141 : vector<32x128xf32>
    %143 = vector.shape_cast %142 : vector<32x128xf32> to vector<2x16x128xf32>
    %c0_48 = arith.constant 0 : index
    %c0_49 = arith.constant 0 : index
    %c0_50 = arith.constant 0 : index
    %144 = vector.load %arg14[%c0_48, %c0_49, %c0_50] : memref<2x16x128xf32, #tpu.memory_space<vmem>>, vector<2x16x128xf32>
    tpu.vector_store %arg14[%c0_48, %c0_49, %c0_50], %143 {strides = array<i32>} : memref<2x16x128xf32, #tpu.memory_space<vmem>>, vector<2x16x128xf32>,
    return
  }
  func.func @transform_0(%arg0: i32) -> (i32, i32, i32) {
    %c0_i32 = arith.constant 0 : i32
    %c0_i32_0 = arith.constant 0 : i32
    %c0_i32_1 = arith.constant 0 : i32
    return %arg0, %c0_i32, %c0_i32_0 : i32, i32, i32
  }
  func.func @transform_1(%arg0: i32) -> (i32, i32) {
    %c0_i32 = arith.constant 0 : i32
    %c0_i32_0 = arith.constant 0 : i32
    %c0_i32_1 = arith.constant 0 : i32
    return %c0_i32, %c0_i32_0 : i32, i32
  }
  func.func @transform_2(%arg0: i32) -> (i32, i32) {
    %c0_i32 = arith.constant 0 : i32
    %c0_i32_0 = arith.constant 0 : i32
    %c0_i32_1 = arith.constant 0 : i32
    return %c0_i32, %c0_i32_0 : i32, i32
  }
  func.func @transform_3(%arg0: i32) -> (i32, i32) {
    %c0_i32 = arith.constant 0 : i32
    %c0_i32_0 = arith.constant 0 : i32
    %c0_i32_1 = arith.constant 0 : i32
    return %c0_i32, %c0_i32_0 : i32, i32
  }
  func.func @transform_4(%arg0: i32) -> (i32, i32) {
    %c0_i32 = arith.constant 0 : i32
    %c0_i32_0 = arith.constant 0 : i32
    %c0_i32_1 = arith.constant 0 : i32
    return %c0_i32, %c0_i32_0 : i32, i32
  }
  func.func @transform_5(%arg0: i32) -> (i32, i32) {
    %c0_i32 = arith.constant 0 : i32
    %c0_i32_0 = arith.constant 0 : i32
    %c0_i32_1 = arith.constant 0 : i32
    return %c0_i32, %c0_i32_0 : i32, i32
  }
  func.func @transform_6(%arg0: i32) -> (i32, i32) {
    %c0_i32 = arith.constant 0 : i32
    %c0_i32_0 = arith.constant 0 : i32
    %c0_i32_1 = arith.constant 0 : i32
    return %c0_i32, %c0_i32_0 : i32, i32
  }
  func.func @transform_7(%arg0: i32) -> (i32, i32) {
    %c0_i32 = arith.constant 0 : i32
    %c0_i32_0 = arith.constant 0 : i32
    %c0_i32_1 = arith.constant 0 : i32
    return %c0_i32, %c0_i32_0 : i32, i32
  }
  func.func @transform_8(%arg0: i32) -> (i32, i32) {
    %c0_i32 = arith.constant 0 : i32
    %c0_i32_0 = arith.constant 0 : i32
    %c0_i32_1 = arith.constant 0 : i32
    return %c0_i32, %c0_i32_0 : i32, i32
  }
  func.func @transform_9(%arg0: i32) -> (i32, i32) {
    %c0_i32 = arith.constant 0 : i32
    %c0_i32_0 = arith.constant 0 : i32
    %c0_i32_1 = arith.constant 0 : i32
    return %c0_i32, %c0_i32_0 : i32, i32
  }
  func.func @transform_10(%arg0: i32) -> (i32, i32) {
    %c0_i32 = arith.constant 0 : i32
    %c0_i32_0 = arith.constant 0 : i32
    %c0_i32_1 = arith.constant 0 : i32
    return %c0_i32, %c0_i32_0 : i32, i32
  }
  func.func @transform_11(%arg0: i32) -> (i32, i32) {
    %c0_i32 = arith.constant 0 : i32
    %c0_i32_0 = arith.constant 0 : i32
    %c0_i32_1 = arith.constant 0 : i32
    return %c0_i32, %c0_i32_0 : i32, i32
  }
  func.func @transform_12(%arg0: i32) -> i32 {
    %c0_i32 = arith.constant 0 : i32
    %c0_i32_0 = arith.constant 0 : i32
    return %c0_i32 : i32
  }
  func.func @transform_13(%arg0: i32) -> (i32, i32, i32) {
    %c0_i32 = arith.constant 0 : i32
    %c0_i32_0 = arith.constant 0 : i32
    %c0_i32_1 = arith.constant 0 : i32
    return %arg0, %c0_i32, %c0_i32_0 : i32, i32, i32
  }
}

</mosaic_0001>

<llo_original>
// kernel: tpu_custom_call.1
$region0: #{tpu_custom_call.1}
  #allocation0 [shape = 'u32[]', space=smem, size = 0x4, offset = 0x4, fixed_abs, tag = 'smem constant byte address 0x4 - core index']
  #allocation1 [shape = 'u32[144,128]{1,0:T(1,128)}', space=vmem, size = 0x12000, scoped, tag = 'internal scratch']
  #allocation2 [shape = 'f32[1]{0:T(128)S(6)}', space=smem, size = 0x200, scoped, tag = 'scoped memory for tpu_custom_call.1']
  %s0 = inlined_call_operand.hbm [shape: f32[2,16,128], index: 0, kind: input, shape index: {}]
  %s1 = inlined_call_operand.hbm [shape: f32[16,128], index: 1, kind: input, shape index: {}]
  %s2 = inlined_call_operand.hbm [shape: f32[16,128], index: 2, kind: input, shape index: {}]
  %s3 = inlined_call_operand.hbm [shape: f32[16,128], index: 3, kind: input, shape index: {}]
  %s4 = inlined_call_operand.vmem [shape: f32[16,128], index: 4, kind: input, shape index: {}]
  %s5 = inlined_call_operand.hbm [shape: bf16[128,768], index: 5, kind: input, shape index: {}]
  %s6 = inlined_call_operand.hbm [shape: bf16[256,128], index: 6, kind: input, shape index: {}]
  %s7 = inlined_call_operand.vmem [shape: f32[1,128], index: 7, kind: input, shape index: {}]
  %s8 = inlined_call_operand.hbm [shape: bf16[128,128], index: 8, kind: input, shape index: {}]
  %s9 = inlined_call_operand.vmem [shape: f32[1,128], index: 9, kind: input, shape index: {}]
  %s10 = inlined_call_operand.hbm [shape: bf16[128,256], index: 10, kind: input, shape index: {}]
  %s11 = inlined_call_operand.vmem [shape: f32[1,256], index: 11, kind: input, shape index: {}]
  %s12 = inlined_call_operand.<no memory space> [shape: f32[1], index: 12, kind: input, shape index: {}]
  %s13 = inlined_call_operand.hbm [shape: f32[2,16,128], index: 13, kind: output, shape index: {}]
  %s14 = sld [smem:[#allocation0]]
  $region94: #{tpu_custom_call.1} parent=0
    _
  %s16 = ssub.s32 1, %s14
  %s17 = scalar_select 0, %s16, %s14
  %18 = sst [smem:[#allocation2]] %s12
  $region1: #{tpu_custom_call.1} parent=0
    #allocation3 [shape = 'u8[16384]{0}', space=vmem, size = 0x4000, scoped, tag = 'input window, operand 0, single buffered']
    #allocation4 [shape = 's32[1]{0}', space=sflag, size = 0x4, scoped, tag = 'scoped memory for tpu_custom_call.1']
    #allocation5 [shape = 's32[1]{0}', space=sflag, size = 0x4, scoped, tag = 'scoped memory for tpu_custom_call.1']
    #allocation6 [shape = 'u8[8192]{0}', space=vmem, size = 0x2000, scoped, tag = 'input window, operand 1, single buffered']
    #allocation7 [shape = 's32[1]{0}', space=sflag, size = 0x4, scoped, tag = 'scoped memory for tpu_custom_call.1']
    #allocation8 [shape = 'u8[8192]{0}', space=vmem, size = 0x2000, scoped, tag = 'input window, operand 2, single buffered']
    #allocation9 [shape = 'u8[8192]{0}', space=vmem, size = 0x2000, scoped, tag = 'input window, operand 3, single buffered']
    #allocation10 [shape = 's32[1]{0}', space=sflag, size = 0x4, scoped, tag = 'scoped memory for tpu_custom_call.1']
    #allocation11 [shape = 'u8[196608]{0}', space=vmem, size = 0x30000, scoped, tag = 'input window, operand 5, single buffered']
    #allocation12 [shape = 'u8[65536]{0}', space=vmem, size = 0x10000, scoped, tag = 'input window, operand 6, single buffered']
    #allocation13 [shape = 's32[1]{0}', space=sflag, size = 0x4, scoped, tag = 'scoped memory for tpu_custom_call.1']
    #allocation14 [shape = 'u8[32768]{0}', space=vmem, size = 0x8000, scoped, tag = 'input window, operand 8, single buffered']
    #allocation15 [shape = 'u8[65536]{0}', space=vmem, size = 0x10000, scoped, tag = 'input window, operand 10, single buffered']
    #allocation16 [shape = 's32[1]{0}', space=sflag, size = 0x4, scoped, tag = 'scoped memory for tpu_custom_call.1']
    #allocation17 [shape = 'u8[16384]{0}', space=vmem, size = 0x4000, scoped, tag = 'output window, operand 0, single buffered']
    %19 = vsyncpa [#allocation4], 0
    %20 = vsyncpa [#allocation7], 0
    %21 = vsyncpa [#allocation10], 0
    %22 = vsyncpa [#allocation13], 0
    %23 = vsyncpa [#allocation16], 0
    %24 = vsyncpa [#allocation5], 0
    // Predicated region
    $region2: #{tpu_custom_call.1} parent=1 // pred_check
      _
    $region3: #{tpu_custom_call.1} parent=1 // pred_check_branch
      %26 = sbr.rel (0) target = $region5
    $region4: #{tpu_custom_call.1} parent=1 // pred_region
      %s28 = ssub.s32 512, 512
      %29 = vsyncadd [#allocation4], %s28
      %s30 = sshll.u32 [#allocation3], 4
      %s31 = int_to_ptr.vmem [resolvable:$true] %s30
      %36 = dma.hbm_to_vmem [thread:$0]  %s0, 512, %s31, [#allocation4], 128, 128, 8
    $region5: #{tpu_custom_call.1} parent=1 // pred_fallthru
      _
    // Predicated region
    $region6: #{tpu_custom_call.1} parent=1 // pred_check
      _
    $region7: #{tpu_custom_call.1} parent=1 // pred_check_branch
      %38 = sbr.rel (0) target = $region9
    $region8: #{tpu_custom_call.1} parent=1 // pred_region
      %s40 = ssub.s32 256, 256
      %41 = vsyncadd [#allocation7], %s40
      %s42 = sshll.u32 [#allocation6], 4
      %s43 = int_to_ptr.vmem [resolvable:$true] %s42
      %48 = dma.hbm_to_vmem [thread:$0]  %s1, 256, %s43, [#allocation7], 128, 128, 8
    $region9: #{tpu_custom_call.1} parent=1 // pred_fallthru
      _
    // Predicated region
    $region10: #{tpu_custom_call.1} parent=1 // pred_check
      _
    $region11: #{tpu_custom_call.1} parent=1 // pred_check_branch
      %50 = sbr.rel (0) target = $region13
    $region12: #{tpu_custom_call.1} parent=1 // pred_region
      %s52 = ssub.s32 256, 256
      %53 = vsyncadd [#allocation7], %s52
      %s54 = sshll.u32 [#allocation8], 4
      %s55 = int_to_ptr.vmem [resolvable:$true] %s54
      %60 = dma.hbm_to_vmem [thread:$0]  %s2, 256, %s55, [#allocation7], 128, 128, 8
    $region13: #{tpu_custom_call.1} parent=1 // pred_fallthru
      _
    // Predicated region
    $region14: #{tpu_custom_call.1} parent=1 // pred_check
      _
    $region15: #{tpu_custom_call.1} parent=1 // pred_check_branch
      %62 = sbr.rel (0) target = $region17
    $region16: #{tpu_custom_call.1} parent=1 // pred_region
      %s64 = ssub.s32 256, 256
      %65 = vsyncadd [#allocation10], %s64
      %s66 = sshll.u32 [#allocation9], 4
      %s67 = int_to_ptr.vmem [resolvable:$true] %s66
      %72 = dma.hbm_to_vmem [thread:$0]  %s3, 256, %s67, [#allocation10], 128, 128, 8
    $region17: #{tpu_custom_call.1} parent=1 // pred_fallthru
      _
    // Predicated region
    $region18: #{tpu_custom_call.1} parent=1 // pred_check
      _
    $region19: #{tpu_custom_call.1} parent=1 // pred_check_branch
      %74 = sbr.rel (0) target = $region21
    $region20: #{tpu_custom_call.1} parent=1 // pred_region
      _
    $region21: #{tpu_custom_call.1} parent=1 // pred_fallthru
      _
    // Predicated region
    $region22: #{tpu_custom_call.1} parent=1 // pred_check
      _
    $region23: #{tpu_custom_call.1} parent=1 // pred_check_branch
      %76 = sbr.rel (0) target = $region25
    $region24: #{tpu_custom_call.1} parent=1 // pred_region
      %s78 = ssub.s32 6144, 6144
      %79 = vsyncadd [#allocation10], %s78
      %s80 = sshll.u32 [#allocation11], 4
      %s81 = int_to_ptr.vmem [resolvable:$true] %s80
      %86 = dma.hbm_to_vmem [thread:$0]  %s5, 6144, %s81, [#allocation10], 384, 384, 24
    $region25: #{tpu_custom_call.1} parent=1 // pred_fallthru
      _
    // Predicated region
    $region26: #{tpu_custom_call.1} parent=1 // pred_check
      _
    $region27: #{tpu_custom_call.1} parent=1 // pred_check_branch
      %88 = sbr.rel (0) target = $region29
    $region28: #{tpu_custom_call.1} parent=1 // pred_region
      %s90 = ssub.s32 2048, 2048
      %91 = vsyncadd [#allocation13], %s90
      %s92 = sshll.u32 [#allocation12], 4
      %s93 = int_to_ptr.vmem [resolvable:$true] %s92
      %98 = dma.hbm_to_vmem [thread:$0]  %s6, 2048, %s93, [#allocation13], 64, 64, 4
    $region29: #{tpu_custom_call.1} parent=1 // pred_fallthru
      _
    // Predicated region
    $region30: #{tpu_custom_call.1} parent=1 // pred_check
      _
    $region31: #{tpu_custom_call.1} parent=1 // pred_check_branch
      %100 = sbr.rel (0) target = $region33
    $region32: #{tpu_custom_call.1} parent=1 // pred_region
      _
    $region33: #{tpu_custom_call.1} parent=1 // pred_fallthru
      _
    // Predicated region
    $region34: #{tpu_custom_call.1} parent=1 // pred_check
      _
    $region35: #{tpu_custom_call.1} parent=1 // pred_check_branch
      %102 = sbr.rel (0) target = $region37
    $region36: #{tpu_custom_call.1} parent=1 // pred_region
      %s104 = ssub.s32 1024, 1024
      %105 = vsyncadd [#allocation13], %s104
      %s106 = sshll.u32 [#allocation14], 4
      %s107 = int_to_ptr.vmem [resolvable:$true] %s106
      %112 = dma.hbm_to_vmem [thread:$0]  %s8, 1024, %s107, [#allocation13], 64, 64, 4
    $region37: #{tpu_custom_call.1} parent=1 // pred_fallthru
      _
    // Predicated region
    $region38: #{tpu_custom_call.1} parent=1 // pred_check
      _
    $region39: #{tpu_custom_call.1} parent=1 // pred_check_branch
      %114 = sbr.rel (0) target = $region41
    $region40: #{tpu_custom_call.1} parent=1 // pred_region
      _
    $region41: #{tpu_custom_call.1} parent=1 // pred_fallthru
      _
    // Predicated region
    $region42: #{tpu_custom_call.1} parent=1 // pred_check
      _
    $region43: #{tpu_custom_call.1} parent=1 // pred_check_branch
      %116 = sbr.rel (0) target = $region45
    $region44: #{tpu_custom_call.1} parent=1 // pred_region
      %s118 = ssub.s32 2048, 2048
      %119 = vsyncadd [#allocation16], %s118
      %s120 = sshll.u32 [#allocation15], 4
      %s121 = int_to_ptr.vmem [resolvable:$true] %s120
      %126 = dma.hbm_to_vmem [thread:$0]  %s10, 2048, %s121, [#allocation16], 128, 128, 8
    $region45: #{tpu_custom_call.1} parent=1 // pred_fallthru
      _
    // Predicated region
    $region46: #{tpu_custom_call.1} parent=1 // pred_check
      _
    $region47: #{tpu_custom_call.1} parent=1 // pred_check_branch
      %128 = sbr.rel (0) target = $region49
    $region48: #{tpu_custom_call.1} parent=1 // pred_region
      _
    $region49: #{tpu_custom_call.1} parent=1 // pred_fallthru
      _
    // Predicated region
    $region50: #{tpu_custom_call.1} parent=1 // pred_check
      _
    $region51: #{tpu_custom_call.1} parent=1 // pred_check_branch
      %130 = sbr.rel (0) target = $region53
    $region52: #{tpu_custom_call.1} parent=1 // pred_region
      _
    $region53: #{tpu_custom_call.1} parent=1 // pred_fallthru
      _
    // Predicated region
    $region54: #{tpu_custom_call.1} parent=1 // pred_check
      _
    $region55: #{tpu_custom_call.1} parent=1 // pred_check_branch
      %132 = sbr.rel (0) target = $region57
    $region56: #{tpu_custom_call.1} parent=1 // pred_region
      %133 = dma.done [#allocation4], 512
    $region57: #{tpu_custom_call.1} parent=1 // pred_fallthru
      _
    // Predicated region
    $region58: #{tpu_custom_call.1} parent=1 // pred_check
      _
    $region59: #{tpu_custom_call.1} parent=1 // pred_check_branch
      %135 = sbr.rel (0) target = $region61
    $region60: #{tpu_custom_call.1} parent=1 // pred_region
      %136 = dma.done [#allocation7], 256
    $region61: #{tpu_custom_call.1} parent=1 // pred_fallthru
      _
    // Predicated region
    $region62: #{tpu_custom_call.1} parent=1 // pred_check
      _
    $region63: #{tpu_custom_call.1} parent=1 // pred_check_branch
      %138 = sbr.rel (0) target = $region65
    $region64: #{tpu_custom_call.1} parent=1 // pred_region
      %139 = dma.done [#allocation7], 256
    $region65: #{tpu_custom_call.1} parent=1 // pred_fallthru
      _
    // Predicated region
    $region66: #{tpu_custom_call.1} parent=1 // pred_check
      _
    $region67: #{tpu_custom_call.1} parent=1 // pred_check_branch
      %141 = sbr.rel (0) target = $region69
    $region68: #{tpu_custom_call.1} parent=1 // pred_region
      %142 = dma.done [#allocation10], 256
    $region69: #{tpu_custom_call.1} parent=1 // pred_fallthru
      _
    // Predicated region
    $region70: #{tpu_custom_call.1} parent=1 // pred_check
      _
    $region71: #{tpu_custom_call.1} parent=1 // pred_check_branch
      %144 = sbr.rel (0) target = $region73
    $region72: #{tpu_custom_call.1} parent=1 // pred_region
      %145 = dma.done [#allocation10], 6144
    $region73: #{tpu_custom_call.1} parent=1 // pred_fallthru
      _
    // Predicated region
    $region74: #{tpu_custom_call.1} parent=1 // pred_check
      _
    $region75: #{tpu_custom_call.1} parent=1 // pred_check_branch
      %147 = sbr.rel (0) target = $region77
    $region76: #{tpu_custom_call.1} parent=1 // pred_region
      %148 = dma.done [#allocation13], 2048
    $region77: #{tpu_custom_call.1} parent=1 // pred_fallthru
      _
    // Predicated region
    $region78: #{tpu_custom_call.1} parent=1 // pred_check
      _
    $region79: #{tpu_custom_call.1} parent=1 // pred_check_branch
      %150 = sbr.rel (0) target = $region81
    $region80: #{tpu_custom_call.1} parent=1 // pred_region
      %151 = dma.done [#allocation13], 1024
    $region81: #{tpu_custom_call.1} parent=1 // pred_fallthru
      _
    // Predicated region
    $region82: #{tpu_custom_call.1} parent=1 // pred_check
      _
    $region83: #{tpu_custom_call.1} parent=1 // pred_check_branch
      %153 = sbr.rel (0) target = $region85
    $region84: #{tpu_custom_call.1} parent=1 // pred_region
      %154 = dma.done [#allocation16], 2048
    $region85: #{tpu_custom_call.1} parent=1 // pred_fallthru
      _
    %v156 = vld [vmem:[#allocation3] sm:$0xff]
    %v157 = vld [vmem:[#allocation3 + $0x8] sm:$0xff]
    %v158 = vld [vmem:[#allocation3 + $0x10] sm:$0xff]
    %v159 = vld [vmem:[#allocation3 + $0x18] sm:$0xff]
    %v160 = vld [vmem:[#allocation6] sm:$0xff]
    %v161 = vld [vmem:[#allocation6 + $0x8] sm:$0xff]
    %v162 = vmul.f32 %v156, %v156
    %v163 = vmul.f32 %v157, %v157
    %v164 = vmul.f32 %v158, %v158
    %v165 = vmul.f32 %v159, %v159
    %166 = vadd.xlane.f32.xlu0 %v162
    %v167 = vpop.xlane.xlu0 %166
    %168 = vadd.xlane.f32.xlu0 %v163
    %v169 = vpop.xlane.xlu0 %168
    %170 = vadd.xlane.f32.xlu0 %v164
    %v171 = vpop.xlane.xlu0 %170
    %172 = vadd.xlane.f32.xlu0 %v165
    %v173 = vpop.xlane.xlu0 %172
    %v174 = vadd.f32 %v167, %v169
    %v175 = vrot.slane %v174, 4
    %v176 = vadd.f32 %v174, %v175
    %v177 = vrot.slane %v176, 2
    %v178 = vadd.f32 %v176, %v177
    %v179 = vrot.slane %v178, 1
    %v180 = vadd.f32 %v178, %v179
    %v181 = vadd.f32 %v171, %v173
    %v182 = vrot.slane %v181, 4
    %v183 = vadd.f32 %v181, %v182
    %v184 = vrot.slane %v183, 2
    %v185 = vadd.f32 %v183, %v184
    %v186 = vrot.slane %v185, 1
    %v187 = vadd.f32 %v185, %v186
    %v188 = vmul.f32 %v180, 0.00048828125
    %v189 = vmul.f32 %v187, 0.00048828125
    %v190 = vrsqrt.pop %v188
    %v191 = vrsqrt.pop %v189
    %v192 = vmul.f32 %v156, %v190
    %v193 = vmul.f32 %v157, %v190
    %v194 = vmul.f32 %v158, %v191
    %v195 = vmul.f32 %v159, %v191
    %v196 = vmul.f32 %v160, %v192
    %v197 = vmul.f32 %v161, %v193
    %v198 = vmul.f32 %v160, %v194
    %v199 = vmul.f32 %v161, %v195
    %v200 = vpack.c.bf16 %v197, %v196
    %v201 = vpack.c.bf16 %v199, %v198
    %v202 = vld [vmem:[#allocation11] sm:$0xff]
    %v203 = vld [vmem:[#allocation11 + $0x8] sm:$0xff]
    %v204 = vld [vmem:[#allocation11 + $0x10] sm:$0xff]
    %v205 = vld [vmem:[#allocation11 + $0x18] sm:$0xff]
    %v206 = vld [vmem:[#allocation11 + $0x20] sm:$0xff]
    %v207 = vld [vmem:[#allocation11 + $0x28] sm:$0xff]
    %v208 = vld [vmem:[#allocation11 + $0x30] sm:$0xff]
    %v209 = vld [vmem:[#allocation11 + $0x38] sm:$0xff]
    %v210 = vld [vmem:[#allocation11 + $0x40] sm:$0xff]
    %v211 = vld [vmem:[#allocation11 + $0x48] sm:$0xff]
    %v212 = vld [vmem:[#allocation11 + $0x50] sm:$0xff]
    %v213 = vld [vmem:[#allocation11 + $0x58] sm:$0xff]
    %v214 = vld [vmem:[#allocation11 + $0x60] sm:$0xff]
    %v215 = vld [vmem:[#allocation11 + $0x68] sm:$0xff]
    %v216 = vld [vmem:[#allocation11 + $0x70] sm:$0xff]
    %v217 = vld [vmem:[#allocation11 + $0x78] sm:$0xff]
    %v218 = vld [vmem:[#allocation11 + $0x80] sm:$0xff]
    %v219 = vld [vmem:[#allocation11 + $0x88] sm:$0xff]
    %v220 = vld [vmem:[#allocation11 + $0x90] sm:$0xff]
    %v221 = vld [vmem:[#allocation11 + $0x98] sm:$0xff]
    %v222 = vld [vmem:[#allocation11 + $0xa0] sm:$0xff]
    %v223 = vld [vmem:[#allocation11 + $0xa8] sm:$0xff]
    %v224 = vld [vmem:[#allocation11 + $0xb0] sm:$0xff]
    %v225 = vld [vmem:[#allocation11 + $0xb8] sm:$0xff]
    %v226 = vld [vmem:[#allocation11 + $0xc0] sm:$0xff]
    %v227 = vld [vmem:[#allocation11 + $0xc8] sm:$0xff]
    %v228 = vld [vmem:[#allocation11 + $0xd0] sm:$0xff]
    %v229 = vld [vmem:[#allocation11 + $0xd8] sm:$0xff]
    %v230 = vld [vmem:[#allocation11 + $0xe0] sm:$0xff]
    %v231 = vld [vmem:[#allocation11 + $0xe8] sm:$0xff]
    %v232 = vld [vmem:[#allocation11 + $0xf0] sm:$0xff]
    %v233 = vld [vmem:[#allocation11 + $0xf8] sm:$0xff]
    %v234 = vld [vmem:[#allocation11 + $0x100] sm:$0xff]
    %v235 = vld [vmem:[#allocation11 + $0x108] sm:$0xff]
    %v236 = vld [vmem:[#allocation11 + $0x110] sm:$0xff]
    %v237 = vld [vmem:[#allocation11 + $0x118] sm:$0xff]
    %v238 = vld [vmem:[#allocation11 + $0x120] sm:$0xff]
    %v239 = vld [vmem:[#allocation11 + $0x128] sm:$0xff]
    %v240 = vld [vmem:[#allocation11 + $0x130] sm:$0xff]
    %v241 = vld [vmem:[#allocation11 + $0x138] sm:$0xff]
    %v242 = vld [vmem:[#allocation11 + $0x140] sm:$0xff]
    %v243 = vld [vmem:[#allocation11 + $0x148] sm:$0xff]
    %v244 = vld [vmem:[#allocation11 + $0x150] sm:$0xff]
    %v245 = vld [vmem:[#allocation11 + $0x158] sm:$0xff]
    %v246 = vld [vmem:[#allocation11 + $0x160] sm:$0xff]
    %v247 = vld [vmem:[#allocation11 + $0x168] sm:$0xff]
    %v248 = vld [vmem:[#allocation11 + $0x170] sm:$0xff]
    %v249 = vld [vmem:[#allocation11 + $0x178] sm:$0xff]
    %v298 = vunpack.c.l.b16 %v202
    %v299 = vunpack.c.h.b16 %v202
    %v300 = vunpack.c.l.b16 %v203
    %v301 = vunpack.c.h.b16 %v203
    %v302 = vunpack.c.l.b16 %v204
    %v303 = vunpack.c.h.b16 %v204
    %v304 = vunpack.c.l.b16 %v205
    %v305 = vunpack.c.h.b16 %v205
    %v306 = vunpack.c.l.b16 %v206
    %v307 = vunpack.c.h.b16 %v206
    %v308 = vunpack.c.l.b16 %v207
    %v309 = vunpack.c.h.b16 %v207
    %v310 = vunpack.c.l.b16 %v208
    %v311 = vunpack.c.h.b16 %v208
    %v312 = vunpack.c.l.b16 %v209
    %v313 = vunpack.c.h.b16 %v209
    %v314 = vunpack.c.l.b16 %v210
    %v315 = vunpack.c.h.b16 %v210
    %v316 = vunpack.c.l.b16 %v211
    %v317 = vunpack.c.h.b16 %v211
    %v318 = vunpack.c.l.b16 %v212
    %v319 = vunpack.c.h.b16 %v212
    %v320 = vunpack.c.l.b16 %v213
    %v321 = vunpack.c.h.b16 %v213
    %v322 = vunpack.c.l.b16 %v214
    %v323 = vunpack.c.h.b16 %v214
    %v324 = vunpack.c.l.b16 %v215
    %v325 = vunpack.c.h.b16 %v215
    %v326 = vunpack.c.l.b16 %v216
    %v327 = vunpack.c.h.b16 %v216
    %v328 = vunpack.c.l.b16 %v217
    %v329 = vunpack.c.h.b16 %v217
    %v330 = vunpack.c.l.b16 %v218
    %v331 = vunpack.c.h.b16 %v218
    %v332 = vunpack.c.l.b16 %v219
    %v333 = vunpack.c.h.b16 %v219
    %v334 = vunpack.c.l.b16 %v220
    %v335 = vunpack.c.h.b16 %v220
    %v336 = vunpack.c.l.b16 %v221
    %v337 = vunpack.c.h.b16 %v221
    %v338 = vunpack.c.l.b16 %v222
    %v339 = vunpack.c.h.b16 %v222
    %v340 = vunpack.c.l.b16 %v223
    %v341 = vunpack.c.h.b16 %v223
    %v342 = vunpack.c.l.b16 %v224
    %v343 = vunpack.c.h.b16 %v224
    %v344 = vunpack.c.l.b16 %v225
    %v345 = vunpack.c.h.b16 %v225
    %v346 = vunpack.c.l.b16 %v226
    %v347 = vunpack.c.h.b16 %v226
    %v348 = vunpack.c.l.b16 %v227
    %v349 = vunpack.c.h.b16 %v227
    %v350 = vunpack.c.l.b16 %v228
    %v351 = vunpack.c.h.b16 %v228
    %v352 = vunpack.c.l.b16 %v229
    %v353 = vunpack.c.h.b16 %v229
    %v354 = vunpack.c.l.b16 %v230
    %v355 = vunpack.c.h.b16 %v230
    %v356 = vunpack.c.l.b16 %v231
    %v357 = vunpack.c.h.b16 %v231
    %v358 = vunpack.c.l.b16 %v232
    %v359 = vunpack.c.h.b16 %v232
    %v360 = vunpack.c.l.b16 %v233
    %v361 = vunpack.c.h.b16 %v233
    %v362 = vunpack.c.l.b16 %v234
    %v363 = vunpack.c.h.b16 %v234
    %v364 = vunpack.c.l.b16 %v235
    %v365 = vunpack.c.h.b16 %v235
    %v366 = vunpack.c.l.b16 %v236
    %v367 = vunpack.c.h.b16 %v236
    %v368 = vunpack.c.l.b16 %v237
    %v369 = vunpack.c.h.b16 %v237
    %v370 = vunpack.c.l.b16 %v238
    %v371 = vunpack.c.h.b16 %v238
    %v372 = vunpack.c.l.b16 %v239
    %v373 = vunpack.c.h.b16 %v239
    %v374 = vunpack.c.l.b16 %v240
    %v375 = vunpack.c.h.b16 %v240
    %v376 = vunpack.c.l.b16 %v241
    %v377 = vunpack.c.h.b16 %v241
    %v378 = vunpack.c.l.b16 %v242
    %v379 = vunpack.c.h.b16 %v242
    %v380 = vunpack.c.l.b16 %v243
    %v381 = vunpack.c.h.b16 %v243
    %v382 = vunpack.c.l.b16 %v244
    %v383 = vunpack.c.h.b16 %v244
    %v384 = vunpack.c.l.b16 %v245
    %v385 = vunpack.c.h.b16 %v245
    %v386 = vunpack.c.l.b16 %v246
    %v387 = vunpack.c.h.b16 %v246
    %v388 = vunpack.c.l.b16 %v247
    %v389 = vunpack.c.h.b16 %v247
    %v390 = vunpack.c.l.b16 %v248
    %v391 = vunpack.c.h.b16 %v248
    %v392 = vunpack.c.l.b16 %v249
    %v393 = vunpack.c.h.b16 %v249
    %v394 = vpack.c.b16 %v304, %v298
    %v395 = vpack.c.b16 %v305, %v299
    %v396 = vpack.c.b16 %v306, %v300
    %v397 = vpack.c.b16 %v307, %v301
    %v398 = vpack.c.b16 %v308, %v302
    %v399 = vpack.c.b16 %v309, %v303
    %v400 = vpack.c.b16 %v316, %v310
    %v401 = vpack.c.b16 %v317, %v311
    %v402 = vpack.c.b16 %v318, %v312
    %v403 = vpack.c.b16 %v319, %v313
    %v404 = vpack.c.b16 %v320, %v314
    %v405 = vpack.c.b16 %v321, %v315
    %v406 = vpack.c.b16 %v328, %v322
    %v407 = vpack.c.b16 %v329, %v323
    %v408 = vpack.c.b16 %v330, %v324
    %v409 = vpack.c.b16 %v331, %v325
    %v410 = vpack.c.b16 %v332, %v326
    %v411 = vpack.c.b16 %v333, %v327
    %v412 = vpack.c.b16 %v340, %v334
    %v413 = vpack.c.b16 %v341, %v335
    %v414 = vpack.c.b16 %v342, %v336
    %v415 = vpack.c.b16 %v343, %v337
    %v416 = vpack.c.b16 %v344, %v338
    %v417 = vpack.c.b16 %v345, %v339
    %v418 = vpack.c.b16 %v352, %v346
    %v419 = vpack.c.b16 %v353, %v347
    %v420 = vpack.c.b16 %v354, %v348
    %v421 = vpack.c.b16 %v355, %v349
    %v422 = vpack.c.b16 %v356, %v350
    %v423 = vpack.c.b16 %v357, %v351
    %v424 = vpack.c.b16 %v364, %v358
    %v425 = vpack.c.b16 %v365, %v359
    %v426 = vpack.c.b16 %v366, %v360
    %v427 = vpack.c.b16 %v367, %v361
    %v428 = vpack.c.b16 %v368, %v362
    %v429 = vpack.c.b16 %v369, %v363
    %v430 = vpack.c.b16 %v376, %v370
    %v431 = vpack.c.b16 %v377, %v371
    %v432 = vpack.c.b16 %v378, %v372
    %v433 = vpack.c.b16 %v379, %v373
    %v434 = vpack.c.b16 %v380, %v374
    %v435 = vpack.c.b16 %v381, %v375
    %v436 = vpack.c.b16 %v388, %v382
    %v437 = vpack.c.b16 %v389, %v383
    %v438 = vpack.c.b16 %v390, %v384
    %v439 = vpack.c.b16 %v391, %v385
    %v440 = vpack.c.b16 %v392, %v386
    %v441 = vpack.c.b16 %v393, %v387
    %490 = vmatprep.subr.bf16.mxu0 %v395
    %491 = vmatpush1.bf16.msra.mxu0 %v394
    %492 = vmatprep.subr.bf16.mxu0 %v401
    %493 = vmatpush1.bf16.msra.mxu0 %v400
    %494 = vmatprep.subr.bf16.mxu0 %v407
    %495 = vmatpush1.bf16.msra.mxu0 %v406
    %496 = vmatprep.subr.bf16.mxu0 %v413
    %497 = vmatpush1.bf16.msra.mxu0 %v412
    %498 = vmatprep.subr.bf16.mxu0 %v419
    %499 = vmatpush1.bf16.msra.mxu0 %v418
    %500 = vmatprep.subr.bf16.mxu0 %v425
    %501 = vmatpush1.bf16.msra.mxu0 %v424
    %502 = vmatprep.subr.bf16.mxu0 %v431
    %503 = vmatpush1.bf16.msra.mxu0 %v430
    %504 = vmatprep.subr.bf16.mxu0 %v437
    %505 = vmatpush1.bf16.msra.mxu0 %v436
    %506 = vmatprep.subr.bf16.mxu0 0
    %507 = vmatpush1.bf16.msra.mxu0 0
    %508 = vmatprep.subr.bf16.mxu0 0
    %509 = vmatpush1.bf16.msra.mxu0 0
    %510 = vmatprep.subr.bf16.mxu0 0
    %511 = vmatpush1.bf16.msra.mxu0 0
    %512 = vmatprep.subr.bf16.mxu0 0
    %513 = vmatpush1.bf16.msra.mxu0 0
    %514 = vmatprep.subr.bf16.mxu0 0
    %515 = vmatpush1.bf16.msra.mxu0 0
    %516 = vmatprep.subr.bf16.mxu0 0
    %517 = vmatpush1.bf16.msra.mxu0 0
    %518 = vmatprep.subr.bf16.mxu0 0
    %519 = vmatpush1.bf16.msra.mxu0 0
    %520 = vmatprep.subr.bf16.mxu0 0
    %521 = vmatpush1.bf16.msra.mxu0 0
    %522 = vmatprep.mubr.bf16.mxu0 0
    %523 = vmatmul.mubr.bf16.gmra.mrb[0].mxu0 %v200
    %v524 = vpop.f32.mrb[0].mxu0
    %v525 = vadd.f32 0.0, %v524
    %v526 = vpop.f32.mrb[0].mxu0
    %v527 = vadd.f32 0.0, %v526
    %v528 = vpop.f32.mrb[0].mxu0
    %v529 = vadd.f32 0.0, %v528
    %v530 = vpop.f32.mrb[0].mxu0
    %v531 = vadd.f32 0.0, %v530
    %532 = vmatprep.mubr.bf16.mxu0 0
    %533 = vmatmul.mubr.bf16.gmra.mrb[0].mxu0 %v201
    %v534 = vpop.f32.mrb[0].mxu0
    %v535 = vadd.f32 0.0, %v534
    %v536 = vpop.f32.mrb[0].mxu0
    %v537 = vadd.f32 0.0, %v536
    %v538 = vpop.f32.mrb[0].mxu0
    %v539 = vadd.f32 0.0, %v538
    %v540 = vpop.f32.mrb[0].mxu0
    %v541 = vadd.f32 0.0, %v540
    %542 = vdwg.mxu0
    %543 = vmatprep.subr.bf16.mxu0 %v397
    %544 = vmatpush1.bf16.msra.mxu0 %v396
    %545 = vmatprep.subr.bf16.mxu0 %v403
    %546 = vmatpush1.bf16.msra.mxu0 %v402
    %547 = vmatprep.subr.bf16.mxu0 %v409
    %548 = vmatpush1.bf16.msra.mxu0 %v408
    %549 = vmatprep.subr.bf16.mxu0 %v415
    %550 = vmatpush1.bf16.msra.mxu0 %v414
    %551 = vmatprep.subr.bf16.mxu0 %v421
    %552 = vmatpush1.bf16.msra.mxu0 %v420
    %553 = vmatprep.subr.bf16.mxu0 %v427
    %554 = vmatpush1.bf16.msra.mxu0 %v426
    %555 = vmatprep.subr.bf16.mxu0 %v433
    %556 = vmatpush1.bf16.msra.mxu0 %v432
    %557 = vmatprep.subr.bf16.mxu0 %v439
    %558 = vmatpush1.bf16.msra.mxu0 %v438
    %559 = vmatprep.subr.bf16.mxu0 0
    %560 = vmatpush1.bf16.msra.mxu0 0
    %561 = vmatprep.subr.bf16.mxu0 0
    %562 = vmatpush1.bf16.msra.mxu0 0
    %563 = vmatprep.subr.bf16.mxu0 0
    %564 = vmatpush1.bf16.msra.mxu0 0
    %565 = vmatprep.subr.bf16.mxu0 0
    %566 = vmatpush1.bf16.msra.mxu0 0
    %567 = vmatprep.subr.bf16.mxu0 0
    %568 = vmatpush1.bf16.msra.mxu0 0
    %569 = vmatprep.subr.bf16.mxu0 0
    %570 = vmatpush1.bf16.msra.mxu0 0
    %571 = vmatprep.subr.bf16.mxu0 0
    %572 = vmatpush1.bf16.msra.mxu0 0
    %573 = vmatprep.subr.bf16.mxu0 0
    %574 = vmatpush1.bf16.msra.mxu0 0
    %575 = vmatprep.mubr.bf16.mxu0 0
    %576 = vmatmul.mubr.bf16.gmra.mrb[0].mxu0 %v200
    %v577 = vpop.f32.mrb[0].mxu0
    %v578 = vadd.f32 0.0, %v577
    %v579 = vpop.f32.mrb[0].mxu0
    %v580 = vadd.f32 0.0, %v579
    %v581 = vpop.f32.mrb[0].mxu0
    %v582 = vadd.f32 0.0, %v581
    %v583 = vpop.f32.mrb[0].mxu0
    %v584 = vadd.f32 0.0, %v583
    %585 = vmatprep.mubr.bf16.mxu0 0
    %586 = vmatmul.mubr.bf16.gmra.mrb[0].mxu0 %v201
    %v587 = vpop.f32.mrb[0].mxu0
    %v588 = vadd.f32 0.0, %v587
    %v589 = vpop.f32.mrb[0].mxu0
    %v590 = vadd.f32 0.0, %v589
    %v591 = vpop.f32.mrb[0].mxu0
    %v592 = vadd.f32 0.0, %v591
    %v593 = vpop.f32.mrb[0].mxu0
    %v594 = vadd.f32 0.0, %v593
    %595 = vdwg.mxu0
    %596 = vmatprep.subr.bf16.mxu0 %v399
    %597 = vmatpush1.bf16.msra.mxu0 %v398
    %598 = vmatprep.subr.bf16.mxu0 %v405
    %599 = vmatpush1.bf16.msra.mxu0 %v404
    %600 = vmatprep.subr.bf16.mxu0 %v411
    %601 = vmatpush1.bf16.msra.mxu0 %v410
    %602 = vmatprep.subr.bf16.mxu0 %v417
    %603 = vmatpush1.bf16.msra.mxu0 %v416
    %604 = vmatprep.subr.bf16.mxu0 %v423
    %605 = vmatpush1.bf16.msra.mxu0 %v422
    %606 = vmatprep.subr.bf16.mxu0 %v429
    %607 = vmatpush1.bf16.msra.mxu0 %v428
    %608 = vmatprep.subr.bf16.mxu0 %v435
    %609 = vmatpush1.bf16.msra.mxu0 %v434
    %610 = vmatprep.subr.bf16.mxu0 %v441
    %611 = vmatpush1.bf16.msra.mxu0 %v440
    %612 = vmatprep.subr.bf16.mxu0 0
    %613 = vmatpush1.bf16.msra.mxu0 0
    %614 = vmatprep.subr.bf16.mxu0 0
    %615 = vmatpush1.bf16.msra.mxu0 0
    %616 = vmatprep.subr.bf16.mxu0 0
    %617 = vmatpush1.bf16.msra.mxu0 0
    %618 = vmatprep.subr.bf16.mxu0 0
    %619 = vmatpush1.bf16.msra.mxu0 0
    %620 = vmatprep.subr.bf16.mxu0 0
    %621 = vmatpush1.bf16.msra.mxu0 0
    %622 = vmatprep.subr.bf16.mxu0 0
    %623 = vmatpush1.bf16.msra.mxu0 0
    %624 = vmatprep.subr.bf16.mxu0 0
    %625 = vmatpush1.bf16.msra.mxu0 0
    %626 = vmatprep.subr.bf16.mxu0 0
    %627 = vmatpush1.bf16.msra.mxu0 0
    %628 = vmatprep.mubr.bf16.mxu0 0
    %629 = vmatmul.mubr.bf16.gmra.mrb[0].mxu0 %v200
    %v630 = vpop.f32.mrb[0].mxu0
    %v631 = vadd.f32 0.0, %v630
    %v632 = vpop.f32.mrb[0].mxu0
    %v633 = vadd.f32 0.0, %v632
    %v634 = vpop.f32.mrb[0].mxu0
    %v635 = vadd.f32 0.0, %v634
    %v636 = vpop.f32.mrb[0].mxu0
    %v637 = vadd.f32 0.0, %v636
    %638 = vmatprep.mubr.bf16.mxu0 0
    %639 = vmatmul.mubr.bf16.gmra.mrb[0].mxu0 %v201
    %v640 = vpop.f32.mrb[0].mxu0
    %v641 = vadd.f32 0.0, %v640
    %v642 = vpop.f32.mrb[0].mxu0
    %v643 = vadd.f32 0.0, %v642
    %v644 = vpop.f32.mrb[0].mxu0
    %v645 = vadd.f32 0.0, %v644
    %v646 = vpop.f32.mrb[0].mxu0
    %v647 = vadd.f32 0.0, %v646
    %648 = vdwg.mxu0
    %v649 = vld [vmem:[#allocation8] sm:$0xff]
    %v650 = vld [vmem:[#allocation8 + $0x8] sm:$0xff]
    %v651 = vld [vmem:[#allocation9] sm:$0xff]
    %v652 = vld [vmem:[#allocation9 + $0x8] sm:$0xff]
    %v653 = vld [vmem:[%s4] sm:$0xff]
    %v654 = vld [vmem:[%s4 + $0x8] sm:$0xff]
    %v655 = vmul.f32 %v525, %v649
    %v656 = vmul.f32 %v527, %v649
    %v657 = vmul.f32 %v529, %v650
    %v658 = vmul.f32 %v531, %v650
    %v659 = vmul.f32 %v535, %v649
    %v660 = vmul.f32 %v537, %v649
    %v661 = vmul.f32 %v539, %v650
    %v662 = vmul.f32 %v541, %v650
    %663 = vrot.lane.b32.xlu0 %v525, 127
    %v664 = vpop.permute.xlu0 %663
    %665 = vrot.lane.b32.xlu0 %v529, 127
    %v666 = vpop.permute.xlu0 %665
    %667 = vrot.lane.b32.xlu0 %v535, 127
    %v668 = vpop.permute.xlu0 %667
    %669 = vrot.lane.b32.xlu0 %v539, 127
    %v670 = vpop.permute.xlu0 %669
    %671 = vrot.lane.b32.xlu0 %v527, 127
    %v672 = vpop.permute.xlu0 %671
    %673 = vrot.lane.b32.xlu0 %v531, 127
    %v674 = vpop.permute.xlu0 %673
    %675 = vrot.lane.b32.xlu0 %v537, 127
    %v676 = vpop.permute.xlu0 %675
    %677 = vrot.lane.b32.xlu0 %v541, 127
    %v678 = vpop.permute.xlu0 %677
    %v679 = vlaneseq
    %v680 = vand.u32 %v679, 127
    %vm681 = vcmp.lt.s32.totalorder %v680, 127
    %v682 = vsel %vm681, %v664, %v672
    %v683 = vsel %vm681, %v666, %v674
    %v684 = vsel %vm681, %v668, %v676
    %v685 = vsel %vm681, %v670, %v678
    %v686 = vsel %vm681, %v672, %v664
    %v687 = vsel %vm681, %v674, %v666
    %v688 = vsel %vm681, %v676, %v668
    %v689 = vsel %vm681, %v678, %v670
    %v690 = vmul.f32 %v682, %v651
    %v691 = vmul.f32 %v686, %v651
    %v692 = vmul.f32 %v683, %v652
    %v693 = vmul.f32 %v687, %v652
    %v694 = vmul.f32 %v684, %v651
    %v695 = vmul.f32 %v688, %v651
    %v696 = vmul.f32 %v685, %v652
    %v697 = vmul.f32 %v689, %v652
    %v698 = vadd.f32 %v655, %v690
    %v699 = vadd.f32 %v656, %v691
    %v700 = vadd.f32 %v657, %v692
    %v701 = vadd.f32 %v658, %v693
    %v702 = vadd.f32 %v659, %v694
    %v703 = vadd.f32 %v660, %v695
    %v704 = vadd.f32 %v661, %v696
    %v705 = vadd.f32 %v662, %v697
    %706 = vrot.lane.b32.xlu0 %v525, 1
    %v707 = vpop.permute.xlu0 %706
    %708 = vrot.lane.b32.xlu0 %v529, 1
    %v709 = vpop.permute.xlu0 %708
    %710 = vrot.lane.b32.xlu0 %v535, 1
    %v711 = vpop.permute.xlu0 %710
    %712 = vrot.lane.b32.xlu0 %v539, 1
    %v713 = vpop.permute.xlu0 %712
    %714 = vrot.lane.b32.xlu0 %v527, 1
    %v715 = vpop.permute.xlu0 %714
    %716 = vrot.lane.b32.xlu0 %v531, 1
    %v717 = vpop.permute.xlu0 %716
    %718 = vrot.lane.b32.xlu0 %v537, 1
    %v719 = vpop.permute.xlu0 %718
    %720 = vrot.lane.b32.xlu0 %v541, 1
    %v721 = vpop.permute.xlu0 %720
    %vm722 = vcmp.lt.s32.totalorder %v680, 1
    %v723 = vsel %vm722, %v707, %v715
    %v724 = vsel %vm722, %v709, %v717
    %v725 = vsel %vm722, %v711, %v719
    %v726 = vsel %vm722, %v713, %v721
    %v727 = vsel %vm722, %v715, %v707
    %v728 = vsel %vm722, %v717, %v709
    %v729 = vsel %vm722, %v719, %v711
    %v730 = vsel %vm722, %v721, %v713
    %v731 = vmul.f32 %v727, %v653
    %v732 = vmul.f32 %v723, %v653
    %v733 = vmul.f32 %v728, %v654
    %v734 = vmul.f32 %v724, %v654
    %v735 = vmul.f32 %v729, %v653
    %v736 = vmul.f32 %v725, %v653
    %v737 = vmul.f32 %v730, %v654
    %v738 = vmul.f32 %v726, %v654
    %v739 = vadd.f32 %v698, %v731
    %v740 = vadd.f32 %v699, %v732
    %v741 = vadd.f32 %v700, %v733
    %v742 = vadd.f32 %v701, %v734
    %v743 = vadd.f32 %v702, %v735
    %v744 = vadd.f32 %v703, %v736
    %v745 = vadd.f32 %v704, %v737
    %v746 = vadd.f32 %v705, %v738
    %v747 = vmul.f32 %v739, 0.088388346
    %v748 = vmul.f32 %v740, 0.088388346
    %v749 = vmul.f32 %v741, 0.088388346
    %v750 = vmul.f32 %v742, 0.088388346
    %v751 = vmul.f32 %v743, 0.088388346
    %v752 = vmul.f32 %v744, 0.088388346
    %v753 = vmul.f32 %v745, 0.088388346
    %v754 = vmul.f32 %v746, 0.088388346
    %v755 = vpack.c.bf16 %v749, %v747
    %v756 = vpack.c.bf16 %v750, %v748
    %v757 = vpack.c.bf16 %v753, %v751
    %v758 = vpack.c.bf16 %v754, %v752
    %v759 = vmul.f32 %v578, %v649
    %v760 = vmul.f32 %v580, %v649
    %v761 = vmul.f32 %v582, %v650
    %v762 = vmul.f32 %v584, %v650
    %v763 = vmul.f32 %v588, %v649
    %v764 = vmul.f32 %v590, %v649
    %v765 = vmul.f32 %v592, %v650
    %v766 = vmul.f32 %v594, %v650
    %767 = vrot.lane.b32.xlu0 %v578, 127
    %v768 = vpop.permute.xlu0 %767
    %769 = vrot.lane.b32.xlu0 %v582, 127
    %v770 = vpop.permute.xlu0 %769
    %771 = vrot.lane.b32.xlu0 %v588, 127
    %v772 = vpop.permute.xlu0 %771
    %773 = vrot.lane.b32.xlu0 %v592, 127
    %v774 = vpop.permute.xlu0 %773
    %775 = vrot.lane.b32.xlu0 %v580, 127
    %v776 = vpop.permute.xlu0 %775
    %777 = vrot.lane.b32.xlu0 %v584, 127
    %v778 = vpop.permute.xlu0 %777
    %779 = vrot.lane.b32.xlu0 %v590, 127
    %v780 = vpop.permute.xlu0 %779
    %781 = vrot.lane.b32.xlu0 %v594, 127
    %v782 = vpop.permute.xlu0 %781
    %v783 = vsel %vm681, %v768, %v776
    %v784 = vsel %vm681, %v770, %v778
    %v785 = vsel %vm681, %v772, %v780
    %v786 = vsel %vm681, %v774, %v782
    %v787 = vsel %vm681, %v776, %v768
    %v788 = vsel %vm681, %v778, %v770
    %v789 = vsel %vm681, %v780, %v772
    %v790 = vsel %vm681, %v782, %v774
    %v791 = vmul.f32 %v783, %v651
    %v792 = vmul.f32 %v787, %v651
    %v793 = vmul.f32 %v784, %v652
    %v794 = vmul.f32 %v788, %v652
    %v795 = vmul.f32 %v785, %v651
    %v796 = vmul.f32 %v789, %v651
    %v797 = vmul.f32 %v786, %v652
    %v798 = vmul.f32 %v790, %v652
    %v799 = vadd.f32 %v759, %v791
    %v800 = vadd.f32 %v760, %v792
    %v801 = vadd.f32 %v761, %v793
    %v802 = vadd.f32 %v762, %v794
    %v803 = vadd.f32 %v763, %v795
    %v804 = vadd.f32 %v764, %v796
    %v805 = vadd.f32 %v765, %v797
    %v806 = vadd.f32 %v766, %v798
    %807 = vrot.lane.b32.xlu0 %v578, 1
    %v808 = vpop.permute.xlu0 %807
    %809 = vrot.lane.b32.xlu0 %v582, 1
    %v810 = vpop.permute.xlu0 %809
    %811 = vrot.lane.b32.xlu0 %v588, 1
    %v812 = vpop.permute.xlu0 %811
    %813 = vrot.lane.b32.xlu0 %v592, 1
    %v814 = vpop.permute.xlu0 %813
    %815 = vrot.lane.b32.xlu0 %v580, 1
    %v816 = vpop.permute.xlu0 %815
    %817 = vrot.lane.b32.xlu0 %v584, 1
    %v818 = vpop.permute.xlu0 %817
    %819 = vrot.lane.b32.xlu0 %v590, 1
    %v820 = vpop.permute.xlu0 %819
    %821 = vrot.lane.b32.xlu0 %v594, 1
    %v822 = vpop.permute.xlu0 %821
    %v823 = vsel %vm722, %v808, %v816
    %v824 = vsel %vm722, %v810, %v818
    %v825 = vsel %vm722, %v812, %v820
    %v826 = vsel %vm722, %v814, %v822
    %v827 = vsel %vm722, %v816, %v808
    %v828 = vsel %vm722, %v818, %v810
    %v829 = vsel %vm722, %v820, %v812
    %v830 = vsel %vm722, %v822, %v814
    %v831 = vmul.f32 %v827, %v653
    %v832 = vmul.f32 %v823, %v653
    %v833 = vmul.f32 %v828, %v654
    %v834 = vmul.f32 %v824, %v654
    %v835 = vmul.f32 %v829, %v653
    %v836 = vmul.f32 %v825, %v653
    %v837 = vmul.f32 %v830, %v654
    %v838 = vmul.f32 %v826, %v654
    %v839 = vadd.f32 %v799, %v831
    %v840 = vadd.f32 %v800, %v832
    %v841 = vadd.f32 %v801, %v833
    %v842 = vadd.f32 %v802, %v834
    %v843 = vadd.f32 %v803, %v835
    %v844 = vadd.f32 %v804, %v836
    %v845 = vadd.f32 %v805, %v837
    %v846 = vadd.f32 %v806, %v838
    %v847 = vpack.c.bf16 %v841, %v839
    %v848 = vpack.c.bf16 %v842, %v840
    %v849 = vpack.c.bf16 %v845, %v843
    %v850 = vpack.c.bf16 %v846, %v844
    %v851 = vpack.c.bf16 %v635, %v631
    %v852 = vpack.c.bf16 %v637, %v633
    %v853 = vpack.c.bf16 %v645, %v641
    %v854 = vpack.c.bf16 %v647, %v643
    %v855 = vlaneseq
    %v856 = vshrl.u32 %v855, 7
    %v857 = vadd.s32 %v856, 8
    %vm858 = vcmp.le.s32.totalorder %v680, %v856
    %vm859 = vcmp.le.s32.totalorder %v680, %v857
    %860 = vmatprep.subr.bf16.mxu0 0
    %861 = vmatpush1.bf16.xpose.msra.mxu0 %v847
    %862 = vmatprep.subr.bf16.mxu0 0
    %863 = vmatpush1.bf16.xpose.msra.mxu0 0
    %864 = vmatprep.subr.bf16.mxu0 0
    %865 = vmatpush1.bf16.xpose.msra.mxu0 0
    %866 = vmatprep.subr.bf16.mxu0 0
    %867 = vmatpush1.bf16.xpose.msra.mxu0 0
    %868 = vmatprep.subr.bf16.mxu0 0
    %869 = vmatpush1.bf16.xpose.msra.mxu0 0
    %870 = vmatprep.subr.bf16.mxu0 0
    %871 = vmatpush1.bf16.xpose.msra.mxu0 0
    %872 = vmatprep.subr.bf16.mxu0 0
    %873 = vmatpush1.bf16.xpose.msra.mxu0 0
    %874 = vmatprep.subr.bf16.mxu0 0
    %875 = vmatpush1.bf16.xpose.msra.mxu0 0
    %876 = vmatprep.subr.bf16.mxu0 0
    %877 = vmatpush1.bf16.xpose.msra.mxu0 0
    %878 = vmatprep.subr.bf16.mxu0 0
    %879 = vmatpush1.bf16.xpose.msra.mxu0 0
    %880 = vmatprep.subr.bf16.mxu0 0
    %881 = vmatpush1.bf16.xpose.msra.mxu0 0
    %882 = vmatprep.subr.bf16.mxu0 0
    %883 = vmatpush1.bf16.xpose.msra.mxu0 0
    %884 = vmatprep.subr.bf16.mxu0 0
    %885 = vmatpush1.bf16.xpose.msra.mxu0 0
    %886 = vmatprep.subr.bf16.mxu0 0
    %887 = vmatpush1.bf16.xpose.msra.mxu0 0
    %888 = vmatprep.subr.bf16.mxu0 0
    %889 = vmatpush1.bf16.xpose.msra.mxu0 0
    %890 = vmatprep.subr.bf16.mxu0 0
    %891 = vmatpush1.bf16.xpose.msra.mxu0 0
    %892 = vmatprep.mubr.bf16.mxu0 0
    %893 = vmatmul.mubr.bf16.gmra.mrb[0].mxu0 %v755
    %v894 = vpop.f32.mrb[0].mxu0
    %v895 = vadd.f32 0.0, %v894
    %v896 = vpop.f32.mrb[0].mxu0
    %v897 = vpop.f32.mrb[0].mxu0
    %v898 = vadd.f32 0.0, %v897
    %v899 = vpop.f32.mrb[0].mxu0
    %900 = vdwg.mxu0
    %901 = vmatprep.subr.bf16.mxu0 0
    %902 = vmatpush1.bf16.xpose.msra.mxu0 %v849
    %903 = vmatprep.subr.bf16.mxu0 0
    %904 = vmatpush1.bf16.xpose.msra.mxu0 0
    %905 = vmatprep.subr.bf16.mxu0 0
    %906 = vmatpush1.bf16.xpose.msra.mxu0 0
    %907 = vmatprep.subr.bf16.mxu0 0
    %908 = vmatpush1.bf16.xpose.msra.mxu0 0
    %909 = vmatprep.subr.bf16.mxu0 0
    %910 = vmatpush1.bf16.xpose.msra.mxu0 0
    %911 = vmatprep.subr.bf16.mxu0 0
    %912 = vmatpush1.bf16.xpose.msra.mxu0 0
    %913 = vmatprep.subr.bf16.mxu0 0
    %914 = vmatpush1.bf16.xpose.msra.mxu0 0
    %915 = vmatprep.subr.bf16.mxu0 0
    %916 = vmatpush1.bf16.xpose.msra.mxu0 0
    %917 = vmatprep.subr.bf16.mxu0 0
    %918 = vmatpush1.bf16.xpose.msra.mxu0 0
    %919 = vmatprep.subr.bf16.mxu0 0
    %920 = vmatpush1.bf16.xpose.msra.mxu0 0
    %921 = vmatprep.subr.bf16.mxu0 0
    %922 = vmatpush1.bf16.xpose.msra.mxu0 0
    %923 = vmatprep.subr.bf16.mxu0 0
    %924 = vmatpush1.bf16.xpose.msra.mxu0 0
    %925 = vmatprep.subr.bf16.mxu0 0
    %926 = vmatpush1.bf16.xpose.msra.mxu0 0
    %927 = vmatprep.subr.bf16.mxu0 0
    %928 = vmatpush1.bf16.xpose.msra.mxu0 0
    %929 = vmatprep.subr.bf16.mxu0 0
    %930 = vmatpush1.bf16.xpose.msra.mxu0 0
    %931 = vmatprep.subr.bf16.mxu0 0
    %932 = vmatpush1.bf16.xpose.msra.mxu0 0
    %933 = vmatprep.mubr.bf16.mxu0 0
    %934 = vmatmul.mubr.bf16.gmra.mrb[0].mxu0 %v757
    %v935 = vpop.f32.mrb[0].mxu0
    %v936 = vadd.f32 0.0, %v935
    %v937 = vpop.f32.mrb[0].mxu0
    %v938 = vpop.f32.mrb[0].mxu0
    %v939 = vadd.f32 0.0, %v938
    %v940 = vpop.f32.mrb[0].mxu0
    %941 = vdwg.mxu0
    %v942 = vsel %vm858, %v895, -inf
    %v943 = vsel %vm859, %v898, -inf
    %v944 = vsel %vm858, %v936, -inf
    %v945 = vsel %vm859, %v939, -inf
    %vm946 = vcmask 130048
    %v947 = vsel %vm946, %v942, -inf
    %948 = vmax.xlane.f32.xlu0 %v947
    %v949 = vpop.xlane.xlu0 %948
    %v950 = vsel %vm946, %v943, -inf
    %951 = vmax.xlane.f32.xlu0 %v950
    %v952 = vpop.xlane.xlu0 %951
    %v953 = vsel %vm946, %v944, -inf
    %954 = vmax.xlane.f32.xlu0 %v953
    %v955 = vpop.xlane.xlu0 %954
    %v956 = vsel %vm946, %v945, -inf
    %957 = vmax.xlane.f32.xlu0 %v956
    %v958 = vpop.xlane.xlu0 %957
    %v959 = vsub.f32 %v942, %v949
    %v960 = vsub.f32 %v943, %v952
    %v961 = vsub.f32 %v944, %v955
    %v962 = vsub.f32 %v945, %v958
    %v963 = vmul.f32 %v959, 1.442695
    %v964 = vpow.pop %v963
    %v965 = vmul.f32 %v960, 1.442695
    %v966 = vpow.pop %v965
    %v967 = vmul.f32 %v961, 1.442695
    %v968 = vpow.pop %v967
    %v969 = vmul.f32 %v962, 1.442695
    %v970 = vpow.pop %v969
    %v971 = vsel %vm946, %v964, 0.0
    %972 = vadd.xlane.f32.xlu0 %v971
    %v973 = vpop.xlane.xlu0 %972
    %v974 = vsel %vm946, %v966, 0.0
    %975 = vadd.xlane.f32.xlu0 %v974
    %v976 = vpop.xlane.xlu0 %975
    %v977 = vsel %vm946, %v968, 0.0
    %978 = vadd.xlane.f32.xlu0 %v977
    %v979 = vpop.xlane.xlu0 %978
    %v980 = vsel %vm946, %v970, 0.0
    %981 = vadd.xlane.f32.xlu0 %v980
    %v982 = vpop.xlane.xlu0 %981
    %v983 = vrcp.pop %v973
    %v984 = vrcp.pop %v976
    %v985 = vrcp.pop %v979
    %v986 = vrcp.pop %v982
    %v987 = vmul.f32 %v964, %v983
    %v988 = vmul.f32 %v966, %v984
    %v989 = vmul.f32 %v968, %v985
    %v990 = vmul.f32 %v970, %v986
    %v991 = vpack.c.bf16 %v988, %v987
    %v992 = vpack.c.bf16 %v990, %v989
    %v994 = vsel %vm946, %v991, 0
    %996 = vmatprep.subr.bf16.mxu0 0
    %997 = vmatpush1.bf16.msra.mxu0 %v851
    %998 = vmatprep.subr.bf16.mxu0 0
    %999 = vmatpush1.bf16.msra.mxu0 0
    %1000 = vmatprep.subr.bf16.mxu0 0
    %1001 = vmatpush1.bf16.msra.mxu0 0
    %1002 = vmatprep.subr.bf16.mxu0 0
    %1003 = vmatpush1.bf16.msra.mxu0 0
    %1004 = vmatprep.subr.bf16.mxu0 0
    %1005 = vmatpush1.bf16.msra.mxu0 0
    %1006 = vmatprep.subr.bf16.mxu0 0
    %1007 = vmatpush1.bf16.msra.mxu0 0
    %1008 = vmatprep.subr.bf16.mxu0 0
    %1009 = vmatpush1.bf16.msra.mxu0 0
    %1010 = vmatprep.subr.bf16.mxu0 0
    %1011 = vmatpush1.bf16.msra.mxu0 0
    %1012 = vmatprep.subr.bf16.mxu0 0
    %1013 = vmatpush1.bf16.msra.mxu0 0
    %1014 = vmatprep.subr.bf16.mxu0 0
    %1015 = vmatpush1.bf16.msra.mxu0 0
    %1016 = vmatprep.subr.bf16.mxu0 0
    %1017 = vmatpush1.bf16.msra.mxu0 0
    %1018 = vmatprep.subr.bf16.mxu0 0
    %1019 = vmatpush1.bf16.msra.mxu0 0
    %1020 = vmatprep.subr.bf16.mxu0 0
    %1021 = vmatpush1.bf16.msra.mxu0 0
    %1022 = vmatprep.subr.bf16.mxu0 0
    %1023 = vmatpush1.bf16.msra.mxu0 0
    %1024 = vmatprep.subr.bf16.mxu0 0
    %1025 = vmatpush1.bf16.msra.mxu0 0
    %1026 = vmatprep.subr.bf16.mxu0 0
    %1027 = vmatpush1.bf16.msra.mxu0 0
    %1028 = vmatprep.mubr.bf16.mxu0 0
    %1029 = vmatmul.mubr.bf16.gmra.mrb[0].mxu0 %v994
    %v1030 = vpop.f32.mrb[0].mxu0
    %v1031 = vadd.f32 0.0, %v1030
    %v1032 = vpop.f32.mrb[0].mxu0
    %v1033 = vpop.f32.mrb[0].mxu0
    %v1034 = vadd.f32 0.0, %v1033
    %v1035 = vpop.f32.mrb[0].mxu0
    %1036 = vdwg.mxu0
    %v1038 = vsel %vm946, %v992, 0
    %1040 = vmatprep.subr.bf16.mxu0 0
    %1041 = vmatpush1.bf16.msra.mxu0 %v853
    %1042 = vmatprep.subr.bf16.mxu0 0
    %1043 = vmatpush1.bf16.msra.mxu0 0
    %1044 = vmatprep.subr.bf16.mxu0 0
    %1045 = vmatpush1.bf16.msra.mxu0 0
    %1046 = vmatprep.subr.bf16.mxu0 0
    %1047 = vmatpush1.bf16.msra.mxu0 0
    %1048 = vmatprep.subr.bf16.mxu0 0
    %1049 = vmatpush1.bf16.msra.mxu0 0
    %1050 = vmatprep.subr.bf16.mxu0 0
    %1051 = vmatpush1.bf16.msra.mxu0 0
    %1052 = vmatprep.subr.bf16.mxu0 0
    %1053 = vmatpush1.bf16.msra.mxu0 0
    %1054 = vmatprep.subr.bf16.mxu0 0
    %1055 = vmatpush1.bf16.msra.mxu0 0
    %1056 = vmatprep.subr.bf16.mxu0 0
    %1057 = vmatpush1.bf16.msra.mxu0 0
    %1058 = vmatprep.subr.bf16.mxu0 0
    %1059 = vmatpush1.bf16.msra.mxu0 0
    %1060 = vmatprep.subr.bf16.mxu0 0
    %1061 = vmatpush1.bf16.msra.mxu0 0
    %1062 = vmatprep.subr.bf16.mxu0 0
    %1063 = vmatpush1.bf16.msra.mxu0 0
    %1064 = vmatprep.subr.bf16.mxu0 0
    %1065 = vmatpush1.bf16.msra.mxu0 0
    %1066 = vmatprep.subr.bf16.mxu0 0
    %1067 = vmatpush1.bf16.msra.mxu0 0
    %1068 = vmatprep.subr.bf16.mxu0 0
    %1069 = vmatpush1.bf16.msra.mxu0 0
    %1070 = vmatprep.subr.bf16.mxu0 0
    %1071 = vmatpush1.bf16.msra.mxu0 0
    %1072 = vmatprep.mubr.bf16.mxu0 0
    %1073 = vmatmul.mubr.bf16.gmra.mrb[0].mxu0 %v1038
    %v1074 = vpop.f32.mrb[0].mxu0
    %v1075 = vadd.f32 0.0, %v1074
    %v1076 = vpop.f32.mrb[0].mxu0
    %v1077 = vpop.f32.mrb[0].mxu0
    %v1078 = vadd.f32 0.0, %v1077
    %v1079 = vpop.f32.mrb[0].mxu0
    %1080 = vdwg.mxu0
    %v1081 = vpack.c.bf16 %v1034, %v1031
    %v1082 = vpack.c.bf16 %v1078, %v1075
    %1083 = vmatprep.subr.bf16.mxu0 0
    %1084 = vmatpush1.bf16.xpose.msra.mxu0 %v848
    %1085 = vmatprep.subr.bf16.mxu0 0
    %1086 = vmatpush1.bf16.xpose.msra.mxu0 0
    %1087 = vmatprep.subr.bf16.mxu0 0
    %1088 = vmatpush1.bf16.xpose.msra.mxu0 0
    %1089 = vmatprep.subr.bf16.mxu0 0
    %1090 = vmatpush1.bf16.xpose.msra.mxu0 0
    %1091 = vmatprep.subr.bf16.mxu0 0
    %1092 = vmatpush1.bf16.xpose.msra.mxu0 0
    %1093 = vmatprep.subr.bf16.mxu0 0
    %1094 = vmatpush1.bf16.xpose.msra.mxu0 0
    %1095 = vmatprep.subr.bf16.mxu0 0
    %1096 = vmatpush1.bf16.xpose.msra.mxu0 0
    %1097 = vmatprep.subr.bf16.mxu0 0
    %1098 = vmatpush1.bf16.xpose.msra.mxu0 0
    %1099 = vmatprep.subr.bf16.mxu0 0
    %1100 = vmatpush1.bf16.xpose.msra.mxu0 0
    %1101 = vmatprep.subr.bf16.mxu0 0
    %1102 = vmatpush1.bf16.xpose.msra.mxu0 0
    %1103 = vmatprep.subr.bf16.mxu0 0
    %1104 = vmatpush1.bf16.xpose.msra.mxu0 0
    %1105 = vmatprep.subr.bf16.mxu0 0
    %1106 = vmatpush1.bf16.xpose.msra.mxu0 0
    %1107 = vmatprep.subr.bf16.mxu0 0
    %1108 = vmatpush1.bf16.xpose.msra.mxu0 0
    %1109 = vmatprep.subr.bf16.mxu0 0
    %1110 = vmatpush1.bf16.xpose.msra.mxu0 0
    %1111 = vmatprep.subr.bf16.mxu0 0
    %1112 = vmatpush1.bf16.xpose.msra.mxu0 0
    %1113 = vmatprep.subr.bf16.mxu0 0
    %1114 = vmatpush1.bf16.xpose.msra.mxu0 0
    %1115 = vmatprep.mubr.bf16.mxu0 0
    %1116 = vmatmul.mubr.bf16.gmra.mrb[0].mxu0 %v756
    %v1117 = vpop.f32.mrb[0].mxu0
    %v1118 = vadd.f32 0.0, %v1117
    %v1119 = vpop.f32.mrb[0].mxu0
    %v1120 = vpop.f32.mrb[0].mxu0
    %v1121 = vadd.f32 0.0, %v1120
    %v1122 = vpop.f32.mrb[0].mxu0
    %1123 = vdwg.mxu0
    %1124 = vmatprep.subr.bf16.mxu0 0
    %1125 = vmatpush1.bf16.xpose.msra.mxu0 %v850
    %1126 = vmatprep.subr.bf16.mxu0 0
    %1127 = vmatpush1.bf16.xpose.msra.mxu0 0
    %1128 = vmatprep.subr.bf16.mxu0 0
    %1129 = vmatpush1.bf16.xpose.msra.mxu0 0
    %1130 = vmatprep.subr.bf16.mxu0 0
    %1131 = vmatpush1.bf16.xpose.msra.mxu0 0
    %1132 = vmatprep.subr.bf16.mxu0 0
    %1133 = vmatpush1.bf16.xpose.msra.mxu0 0
    %1134 = vmatprep.subr.bf16.mxu0 0
    %1135 = vmatpush1.bf16.xpose.msra.mxu0 0
    %1136 = vmatprep.subr.bf16.mxu0 0
    %1137 = vmatpush1.bf16.xpose.msra.mxu0 0
    %1138 = vmatprep.subr.bf16.mxu0 0
    %1139 = vmatpush1.bf16.xpose.msra.mxu0 0
    %1140 = vmatprep.subr.bf16.mxu0 0
    %1141 = vmatpush1.bf16.xpose.msra.mxu0 0
    %1142 = vmatprep.subr.bf16.mxu0 0
    %1143 = vmatpush1.bf16.xpose.msra.mxu0 0
    %1144 = vmatprep.subr.bf16.mxu0 0
    %1145 = vmatpush1.bf16.xpose.msra.mxu0 0
    %1146 = vmatprep.subr.bf16.mxu0 0
    %1147 = vmatpush1.bf16.xpose.msra.mxu0 0
    %1148 = vmatprep.subr.bf16.mxu0 0
    %1149 = vmatpush1.bf16.xpose.msra.mxu0 0
    %1150 = vmatprep.subr.bf16.mxu0 0
    %1151 = vmatpush1.bf16.xpose.msra.mxu0 0
    %1152 = vmatprep.subr.bf16.mxu0 0
    %1153 = vmatpush1.bf16.xpose.msra.mxu0 0
    %1154 = vmatprep.subr.bf16.mxu0 0
    %1155 = vmatpush1.bf16.xpose.msra.mxu0 0
    %1156 = vmatprep.mubr.bf16.mxu0 0
    %1157 = vmatmul.mubr.bf16.gmra.mrb[0].mxu0 %v758
    %v1158 = vpop.f32.mrb[0].mxu0
    %v1159 = vadd.f32 0.0, %v1158
    %v1160 = vpop.f32.mrb[0].mxu0
    %v1161 = vpop.f32.mrb[0].mxu0
    %v1162 = vadd.f32 0.0, %v1161
    %v1163 = vpop.f32.mrb[0].mxu0
    %1164 = vdwg.mxu0
    %v1165 = vsel %vm858, %v1118, -inf
    %v1166 = vsel %vm859, %v1121, -inf
    %v1167 = vsel %vm858, %v1159, -inf
    %v1168 = vsel %vm859, %v1162, -inf
    %v1169 = vsel %vm946, %v1165, -inf
    %1170 = vmax.xlane.f32.xlu0 %v1169
    %v1171 = vpop.xlane.xlu0 %1170
    %v1172 = vsel %vm946, %v1166, -inf
    %1173 = vmax.xlane.f32.xlu0 %v1172
    %v1174 = vpop.xlane.xlu0 %1173
    %v1175 = vsel %vm946, %v1167, -inf
    %1176 = vmax.xlane.f32.xlu0 %v1175
    %v1177 = vpop.xlane.xlu0 %1176
    %v1178 = vsel %vm946, %v1168, -inf
    %1179 = vmax.xlane.f32.xlu0 %v1178
    %v1180 = vpop.xlane.xlu0 %1179
    %v1181 = vsub.f32 %v1165, %v1171
    %v1182 = vsub.f32 %v1166, %v1174
    %v1183 = vsub.f32 %v1167, %v1177
    %v1184 = vsub.f32 %v1168, %v1180
    %v1185 = vmul.f32 %v1181, 1.442695
    %v1186 = vpow.pop %v1185
    %v1187 = vmul.f32 %v1182, 1.442695
    %v1188 = vpow.pop %v1187
    %v1189 = vmul.f32 %v1183, 1.442695
    %v1190 = vpow.pop %v1189
    %v1191 = vmul.f32 %v1184, 1.442695
    %v1192 = vpow.pop %v1191
    %v1193 = vsel %vm946, %v1186, 0.0
    %1194 = vadd.xlane.f32.xlu0 %v1193
    %v1195 = vpop.xlane.xlu0 %1194
    %v1196 = vsel %vm946, %v1188, 0.0
    %1197 = vadd.xlane.f32.xlu0 %v1196
    %v1198 = vpop.xlane.xlu0 %1197
    %v1199 = vsel %vm946, %v1190, 0.0
    %1200 = vadd.xlane.f32.xlu0 %v1199
    %v1201 = vpop.xlane.xlu0 %1200
    %v1202 = vsel %vm946, %v1192, 0.0
    %1203 = vadd.xlane.f32.xlu0 %v1202
    %v1204 = vpop.xlane.xlu0 %1203
    %v1205 = vrcp.pop %v1195
    %v1206 = vrcp.pop %v1198
    %v1207 = vrcp.pop %v1201
    %v1208 = vrcp.pop %v1204
    %v1209 = vmul.f32 %v1186, %v1205
    %v1210 = vmul.f32 %v1188, %v1206
    %v1211 = vmul.f32 %v1190, %v1207
    %v1212 = vmul.f32 %v1192, %v1208
    %v1213 = vpack.c.bf16 %v1210, %v1209
    %v1214 = vpack.c.bf16 %v1212, %v1211
    %v1216 = vsel %vm946, %v1213, 0
    %1218 = vmatprep.subr.bf16.mxu0 0
    %1219 = vmatpush1.bf16.msra.mxu0 %v852
    %1220 = vmatprep.subr.bf16.mxu0 0
    %1221 = vmatpush1.bf16.msra.mxu0 0
    %1222 = vmatprep.subr.bf16.mxu0 0
    %1223 = vmatpush1.bf16.msra.mxu0 0
    %1224 = vmatprep.subr.bf16.mxu0 0
    %1225 = vmatpush1.bf16.msra.mxu0 0
    %1226 = vmatprep.subr.bf16.mxu0 0
    %1227 = vmatpush1.bf16.msra.mxu0 0
    %1228 = vmatprep.subr.bf16.mxu0 0
    %1229 = vmatpush1.bf16.msra.mxu0 0
    %1230 = vmatprep.subr.bf16.mxu0 0
    %1231 = vmatpush1.bf16.msra.mxu0 0
    %1232 = vmatprep.subr.bf16.mxu0 0
    %1233 = vmatpush1.bf16.msra.mxu0 0
    %1234 = vmatprep.subr.bf16.mxu0 0
    %1235 = vmatpush1.bf16.msra.mxu0 0
    %1236 = vmatprep.subr.bf16.mxu0 0
    %1237 = vmatpush1.bf16.msra.mxu0 0
    %1238 = vmatprep.subr.bf16.mxu0 0
    %1239 = vmatpush1.bf16.msra.mxu0 0
    %1240 = vmatprep.subr.bf16.mxu0 0
    %1241 = vmatpush1.bf16.msra.mxu0 0
    %1242 = vmatprep.subr.bf16.mxu0 0
    %1243 = vmatpush1.bf16.msra.mxu0 0
    %1244 = vmatprep.subr.bf16.mxu0 0
    %1245 = vmatpush1.bf16.msra.mxu0 0
    %1246 = vmatprep.subr.bf16.mxu0 0
    %1247 = vmatpush1.bf16.msra.mxu0 0
    %1248 = vmatprep.subr.bf16.mxu0 0
    %1249 = vmatpush1.bf16.msra.mxu0 0
    %1250 = vmatprep.mubr.bf16.mxu0 0
    %1251 = vmatmul.mubr.bf16.gmra.mrb[0].mxu0 %v1216
    %v1252 = vpop.f32.mrb[0].mxu0
    %v1253 = vadd.f32 0.0, %v1252
    %v1254 = vpop.f32.mrb[0].mxu0
    %v1255 = vpop.f32.mrb[0].mxu0
    %v1256 = vadd.f32 0.0, %v1255
    %v1257 = vpop.f32.mrb[0].mxu0
    %1258 = vdwg.mxu0
    %v1260 = vsel %vm946, %v1214, 0
    %1262 = vmatprep.subr.bf16.mxu0 0
    %1263 = vmatpush1.bf16.msra.mxu0 %v854
    %1264 = vmatprep.subr.bf16.mxu0 0
    %1265 = vmatpush1.bf16.msra.mxu0 0
    %1266 = vmatprep.subr.bf16.mxu0 0
    %1267 = vmatpush1.bf16.msra.mxu0 0
    %1268 = vmatprep.subr.bf16.mxu0 0
    %1269 = vmatpush1.bf16.msra.mxu0 0
    %1270 = vmatprep.subr.bf16.mxu0 0
    %1271 = vmatpush1.bf16.msra.mxu0 0
    %1272 = vmatprep.subr.bf16.mxu0 0
    %1273 = vmatpush1.bf16.msra.mxu0 0
    %1274 = vmatprep.subr.bf16.mxu0 0
    %1275 = vmatpush1.bf16.msra.mxu0 0
    %1276 = vmatprep.subr.bf16.mxu0 0
    %1277 = vmatpush1.bf16.msra.mxu0 0
    %1278 = vmatprep.subr.bf16.mxu0 0
    %1279 = vmatpush1.bf16.msra.mxu0 0
    %1280 = vmatprep.subr.bf16.mxu0 0
    %1281 = vmatpush1.bf16.msra.mxu0 0
    %1282 = vmatprep.subr.bf16.mxu0 0
    %1283 = vmatpush1.bf16.msra.mxu0 0
    %1284 = vmatprep.subr.bf16.mxu0 0
    %1285 = vmatpush1.bf16.msra.mxu0 0
    %1286 = vmatprep.subr.bf16.mxu0 0
    %1287 = vmatpush1.bf16.msra.mxu0 0
    %1288 = vmatprep.subr.bf16.mxu0 0
    %1289 = vmatpush1.bf16.msra.mxu0 0
    %1290 = vmatprep.subr.bf16.mxu0 0
    %1291 = vmatpush1.bf16.msra.mxu0 0
    %1292 = vmatprep.subr.bf16.mxu0 0
    %1293 = vmatpush1.bf16.msra.mxu0 0
    %1294 = vmatprep.mubr.bf16.mxu0 0
    %1295 = vmatmul.mubr.bf16.gmra.mrb[0].mxu0 %v1260
    %v1296 = vpop.f32.mrb[0].mxu0
    %v1297 = vadd.f32 0.0, %v1296
    %v1298 = vpop.f32.mrb[0].mxu0
    %v1299 = vpop.f32.mrb[0].mxu0
    %v1300 = vadd.f32 0.0, %v1299
    %v1301 = vpop.f32.mrb[0].mxu0
    %1302 = vdwg.mxu0
    %v1303 = vpack.c.bf16 %v1256, %v1253
    %v1304 = vpack.c.bf16 %v1300, %v1297
    %v1305 = vld [vmem:[#allocation12] sm:$0xf]
    %v1306 = vld [vmem:[#allocation12 + $0x4] sm:$0xf]
    %v1307 = vld [vmem:[#allocation12 + $0x8] sm:$0xf]
    %v1308 = vld [vmem:[#allocation12 + $0xc] sm:$0xf]
    %v1309 = vld [vmem:[#allocation12 + $0x10] sm:$0xf]
    %v1310 = vld [vmem:[#allocation12 + $0x14] sm:$0xf]
    %v1311 = vld [vmem:[#allocation12 + $0x18] sm:$0xf]
    %v1312 = vld [vmem:[#allocation12 + $0x1c] sm:$0xf]
    %v1313 = vld [vmem:[#allocation12 + $0x20] sm:$0xf]
    %v1314 = vld [vmem:[#allocation12 + $0x24] sm:$0xf]
    %v1315 = vld [vmem:[#allocation12 + $0x28] sm:$0xf]
    %v1316 = vld [vmem:[#allocation12 + $0x2c] sm:$0xf]
    %v1317 = vld [vmem:[#allocation12 + $0x30] sm:$0xf]
    %v1318 = vld [vmem:[#allocation12 + $0x34] sm:$0xf]
    %v1319 = vld [vmem:[#allocation12 + $0x38] sm:$0xf]
    %v1320 = vld [vmem:[#allocation12 + $0x3c] sm:$0xf]
    %v1321 = vld [vmem:[#allocation12 + $0x40] sm:$0xf]
    %v1322 = vld [vmem:[#allocation12 + $0x44] sm:$0xf]
    %v1323 = vld [vmem:[#allocation12 + $0x48] sm:$0xf]
    %v1324 = vld [vmem:[#allocation12 + $0x4c] sm:$0xf]
    %v1325 = vld [vmem:[#allocation12 + $0x50] sm:$0xf]
    %v1326 = vld [vmem:[#allocation12 + $0x54] sm:$0xf]
    %v1327 = vld [vmem:[#allocation12 + $0x58] sm:$0xf]
    %v1328 = vld [vmem:[#allocation12 + $0x5c] sm:$0xf]
    %v1329 = vld [vmem:[#allocation12 + $0x60] sm:$0xf]
    %v1330 = vld [vmem:[#allocation12 + $0x64] sm:$0xf]
    %v1331 = vld [vmem:[#allocation12 + $0x68] sm:$0xf]
    %v1332 = vld [vmem:[#allocation12 + $0x6c] sm:$0xf]
    %v1333 = vld [vmem:[#allocation12 + $0x70] sm:$0xf]
    %v1334 = vld [vmem:[#allocation12 + $0x74] sm:$0xf]
    %v1335 = vld [vmem:[#allocation12 + $0x78] sm:$0xf]
    %v1336 = vld [vmem:[#allocation12 + $0x7c] sm:$0xf]
    %v1337 = vld [vmem:[%s7] sm:$0x1]
    %v1339 = vlaneseq
    %v1340 = vshrl.u32 %v1339, 7
    %v1341 = vsub.s32 0, %v1340
    %v1342 = vrot.slane %v1337, %v1341
    %v1376 = vunpack.c.l.b16 %v1305
    %v1377 = vunpack.c.l.b16 %v1306
    %v1378 = vunpack.c.l.b16 %v1307
    %v1379 = vunpack.c.l.b16 %v1308
    %v1380 = vunpack.c.l.b16 %v1309
    %v1381 = vunpack.c.l.b16 %v1310
    %v1382 = vunpack.c.l.b16 %v1311
    %v1383 = vunpack.c.l.b16 %v1312
    %v1384 = vunpack.c.l.b16 %v1313
    %v1385 = vunpack.c.l.b16 %v1314
    %v1386 = vunpack.c.l.b16 %v1315
    %v1387 = vunpack.c.l.b16 %v1316
    %v1388 = vunpack.c.l.b16 %v1317
    %v1389 = vunpack.c.l.b16 %v1318
    %v1390 = vunpack.c.l.b16 %v1319
    %v1391 = vunpack.c.l.b16 %v1320
    %v1392 = vunpack.c.l.b16 %v1321
    %v1393 = vunpack.c.l.b16 %v1322
    %v1394 = vunpack.c.l.b16 %v1323
    %v1395 = vunpack.c.l.b16 %v1324
    %v1396 = vunpack.c.l.b16 %v1325
    %v1397 = vunpack.c.l.b16 %v1326
    %v1398 = vunpack.c.l.b16 %v1327
    %v1399 = vunpack.c.l.b16 %v1328
    %v1400 = vunpack.c.l.b16 %v1329
    %v1401 = vunpack.c.l.b16 %v1330
    %v1402 = vunpack.c.l.b16 %v1331
    %v1403 = vunpack.c.l.b16 %v1332
    %v1404 = vunpack.c.l.b16 %v1333
    %v1405 = vunpack.c.l.b16 %v1334
    %v1406 = vunpack.c.l.b16 %v1335
    %v1407 = vunpack.c.l.b16 %v1336
    %v1408 = vpack.c.b16 %v1377, %v1376
    %v1409 = vpack.c.b16 %v1379, %v1378
    %v1410 = vpack.c.b16 %v1381, %v1380
    %v1411 = vpack.c.b16 %v1383, %v1382
    %v1412 = vpack.c.b16 %v1385, %v1384
    %v1413 = vpack.c.b16 %v1387, %v1386
    %v1414 = vpack.c.b16 %v1389, %v1388
    %v1415 = vpack.c.b16 %v1391, %v1390
    %v1416 = vpack.c.b16 %v1393, %v1392
    %v1417 = vpack.c.b16 %v1395, %v1394
    %v1418 = vpack.c.b16 %v1397, %v1396
    %v1419 = vpack.c.b16 %v1399, %v1398
    %v1420 = vpack.c.b16 %v1401, %v1400
    %v1421 = vpack.c.b16 %v1403, %v1402
    %v1422 = vpack.c.b16 %v1405, %v1404
    %v1423 = vpack.c.b16 %v1407, %v1406
    %1440 = vmatprep.subr.bf16.mxu0 0
    %1441 = vmatpush1.bf16.msra.mxu0 %v1408
    %1442 = vmatprep.subr.bf16.mxu0 0
    %1443 = vmatpush1.bf16.msra.mxu0 %v1409
    %1444 = vmatprep.subr.bf16.mxu0 0
    %1445 = vmatpush1.bf16.msra.mxu0 %v1410
    %1446 = vmatprep.subr.bf16.mxu0 0
    %1447 = vmatpush1.bf16.msra.mxu0 %v1411
    %1448 = vmatprep.subr.bf16.mxu0 0
    %1449 = vmatpush1.bf16.msra.mxu0 %v1412
    %1450 = vmatprep.subr.bf16.mxu0 0
    %1451 = vmatpush1.bf16.msra.mxu0 %v1413
    %1452 = vmatprep.subr.bf16.mxu0 0
    %1453 = vmatpush1.bf16.msra.mxu0 %v1414
    %1454 = vmatprep.subr.bf16.mxu0 0
    %1455 = vmatpush1.bf16.msra.mxu0 %v1415
    %1456 = vmatprep.subr.bf16.mxu0 0
    %1457 = vmatpush1.bf16.msra.mxu0 %v1416
    %1458 = vmatprep.subr.bf16.mxu0 0
    %1459 = vmatpush1.bf16.msra.mxu0 %v1417
    %1460 = vmatprep.subr.bf16.mxu0 0
    %1461 = vmatpush1.bf16.msra.mxu0 %v1418
    %1462 = vmatprep.subr.bf16.mxu0 0
    %1463 = vmatpush1.bf16.msra.mxu0 %v1419
    %1464 = vmatprep.subr.bf16.mxu0 0
    %1465 = vmatpush1.bf16.msra.mxu0 %v1420
    %1466 = vmatprep.subr.bf16.mxu0 0
    %1467 = vmatpush1.bf16.msra.mxu0 %v1421
    %1468 = vmatprep.subr.bf16.mxu0 0
    %1469 = vmatpush1.bf16.msra.mxu0 %v1422
    %1470 = vmatprep.subr.bf16.mxu0 0
    %1471 = vmatpush1.bf16.msra.mxu0 %v1423
    %1472 = vmatprep.mubr.bf16.mxu0 %v1303
    %1473 = vmatmul.mubr.bf16.gmra.mrb[0].mxu0 %v1081
    %v1474 = vpop.f32.mrb[0].mxu0
    %v1475 = vadd.f32 %v1342, %v1474
    %v1476 = vpop.f32.mrb[0].mxu0
    %v1477 = vpop.f32.mrb[0].mxu0
    %v1478 = vadd.f32 %v1342, %v1477
    %v1479 = vpop.f32.mrb[0].mxu0
    %1480 = vmatprep.mubr.bf16.mxu0 %v1304
    %1481 = vmatmul.mubr.bf16.gmra.mrb[0].mxu0 %v1082
    %v1482 = vpop.f32.mrb[0].mxu0
    %v1483 = vadd.f32 %v1342, %v1482
    %v1484 = vpop.f32.mrb[0].mxu0
    %v1485 = vpop.f32.mrb[0].mxu0
    %v1486 = vadd.f32 %v1342, %v1485
    %v1487 = vpop.f32.mrb[0].mxu0
    %1488 = vdwg.mxu0
    %v1489 = vadd.f32 %v196, %v1475
    %v1490 = vadd.f32 %v197, %v1478
    %v1491 = vadd.f32 %v198, %v1483
    %v1492 = vadd.f32 %v199, %v1486
    %v1493 = vmul.f32 %v1489, %v1489
    %v1494 = vmul.f32 %v1490, %v1490
    %v1495 = vmul.f32 %v1491, %v1491
    %v1496 = vmul.f32 %v1492, %v1492
    %1497 = vadd.xlane.f32.xlu0 %v1493
    %v1498 = vpop.xlane.xlu0 %1497
    %1499 = vadd.xlane.f32.xlu0 %v1494
    %v1500 = vpop.xlane.xlu0 %1499
    %1501 = vadd.xlane.f32.xlu0 %v1495
    %v1502 = vpop.xlane.xlu0 %1501
    %1503 = vadd.xlane.f32.xlu0 %v1496
    %v1504 = vpop.xlane.xlu0 %1503
    %v1505 = vadd.f32 %v1498, %v1500
    %v1506 = vrot.slane %v1505, 4
    %v1507 = vadd.f32 %v1505, %v1506
    %v1508 = vrot.slane %v1507, 2
    %v1509 = vadd.f32 %v1507, %v1508
    %v1510 = vrot.slane %v1509, 1
    %v1511 = vadd.f32 %v1509, %v1510
    %v1512 = vadd.f32 %v1502, %v1504
    %v1513 = vrot.slane %v1512, 4
    %v1514 = vadd.f32 %v1512, %v1513
    %v1515 = vrot.slane %v1514, 2
    %v1516 = vadd.f32 %v1514, %v1515
    %v1517 = vrot.slane %v1516, 1
    %v1518 = vadd.f32 %v1516, %v1517
    %v1519 = vmul.f32 %v1511, 0.00048828125
    %v1520 = vmul.f32 %v1518, 0.00048828125
    %v1521 = vrsqrt.pop %v1519
    %v1522 = vrsqrt.pop %v1520
    %v1523 = vmul.f32 %v1489, %v1521
    %v1524 = vmul.f32 %v1490, %v1521
    %v1525 = vmul.f32 %v1491, %v1522
    %v1526 = vmul.f32 %v1492, %v1522
    %v1527 = vmul.f32 %v160, %v1523
    %v1528 = vmul.f32 %v161, %v1524
    %v1529 = vmul.f32 %v160, %v1525
    %v1530 = vmul.f32 %v161, %v1526
    %v1531 = vpack.c.bf16 %v1528, %v1527
    %v1532 = vpack.c.bf16 %v1530, %v1529
    %v1533 = vld [vmem:[#allocation14] sm:$0xf]
    %v1534 = vld [vmem:[#allocation14 + $0x4] sm:$0xf]
    %v1535 = vld [vmem:[#allocation14 + $0x8] sm:$0xf]
    %v1536 = vld [vmem:[#allocation14 + $0xc] sm:$0xf]
    %v1537 = vld [vmem:[#allocation14 + $0x10] sm:$0xf]
    %v1538 = vld [vmem:[#allocation14 + $0x14] sm:$0xf]
    %v1539 = vld [vmem:[#allocation14 + $0x18] sm:$0xf]
    %v1540 = vld [vmem:[#allocation14 + $0x1c] sm:$0xf]
    %v1541 = vld [vmem:[#allocation14 + $0x20] sm:$0xf]
    %v1542 = vld [vmem:[#allocation14 + $0x24] sm:$0xf]
    %v1543 = vld [vmem:[#allocation14 + $0x28] sm:$0xf]
    %v1544 = vld [vmem:[#allocation14 + $0x2c] sm:$0xf]
    %v1545 = vld [vmem:[#allocation14 + $0x30] sm:$0xf]
    %v1546 = vld [vmem:[#allocation14 + $0x34] sm:$0xf]
    %v1547 = vld [vmem:[#allocation14 + $0x38] sm:$0xf]
    %v1548 = vld [vmem:[#allocation14 + $0x3c] sm:$0xf]
    %v1549 = vld [vmem:[%s9] sm:$0x1]
    %v1551 = vlaneseq
    %v1552 = vshrl.u32 %v1551, 7
    %v1553 = vsub.s32 0, %v1552
    %v1554 = vrot.slane %v1549, %v1553
    %v1572 = vunpack.c.l.b16 %v1533
    %v1573 = vunpack.c.l.b16 %v1534
    %v1574 = vunpack.c.l.b16 %v1535
    %v1575 = vunpack.c.l.b16 %v1536
    %v1576 = vunpack.c.l.b16 %v1537
    %v1577 = vunpack.c.l.b16 %v1538
    %v1578 = vunpack.c.l.b16 %v1539
    %v1579 = vunpack.c.l.b16 %v1540
    %v1580 = vunpack.c.l.b16 %v1541
    %v1581 = vunpack.c.l.b16 %v1542
    %v1582 = vunpack.c.l.b16 %v1543
    %v1583 = vunpack.c.l.b16 %v1544
    %v1584 = vunpack.c.l.b16 %v1545
    %v1585 = vunpack.c.l.b16 %v1546
    %v1586 = vunpack.c.l.b16 %v1547
    %v1587 = vunpack.c.l.b16 %v1548
    %v1588 = vpack.c.b16 %v1573, %v1572
    %v1589 = vpack.c.b16 %v1575, %v1574
    %v1590 = vpack.c.b16 %v1577, %v1576
    %v1591 = vpack.c.b16 %v1579, %v1578
    %v1592 = vpack.c.b16 %v1581, %v1580
    %v1593 = vpack.c.b16 %v1583, %v1582
    %v1594 = vpack.c.b16 %v1585, %v1584
    %v1595 = vpack.c.b16 %v1587, %v1586
    %1604 = vmatprep.subr.bf16.mxu0 0
    %1605 = vmatpush1.bf16.msra.mxu0 %v1588
    %1606 = vmatprep.subr.bf16.mxu0 0
    %1607 = vmatpush1.bf16.msra.mxu0 %v1589
    %1608 = vmatprep.subr.bf16.mxu0 0
    %1609 = vmatpush1.bf16.msra.mxu0 %v1590
    %1610 = vmatprep.subr.bf16.mxu0 0
    %1611 = vmatpush1.bf16.msra.mxu0 %v1591
    %1612 = vmatprep.subr.bf16.mxu0 0
    %1613 = vmatpush1.bf16.msra.mxu0 %v1592
    %1614 = vmatprep.subr.bf16.mxu0 0
    %1615 = vmatpush1.bf16.msra.mxu0 %v1593
    %1616 = vmatprep.subr.bf16.mxu0 0
    %1617 = vmatpush1.bf16.msra.mxu0 %v1594
    %1618 = vmatprep.subr.bf16.mxu0 0
    %1619 = vmatpush1.bf16.msra.mxu0 %v1595
    %1620 = vmatprep.subr.bf16.mxu0 0
    %1621 = vmatpush1.bf16.msra.mxu0 0
    %1622 = vmatprep.subr.bf16.mxu0 0
    %1623 = vmatpush1.bf16.msra.mxu0 0
    %1624 = vmatprep.subr.bf16.mxu0 0
    %1625 = vmatpush1.bf16.msra.mxu0 0
    %1626 = vmatprep.subr.bf16.mxu0 0
    %1627 = vmatpush1.bf16.msra.mxu0 0
    %1628 = vmatprep.subr.bf16.mxu0 0
    %1629 = vmatpush1.bf16.msra.mxu0 0
    %1630 = vmatprep.subr.bf16.mxu0 0
    %1631 = vmatpush1.bf16.msra.mxu0 0
    %1632 = vmatprep.subr.bf16.mxu0 0
    %1633 = vmatpush1.bf16.msra.mxu0 0
    %1634 = vmatprep.subr.bf16.mxu0 0
    %1635 = vmatpush1.bf16.msra.mxu0 0
    %1636 = vmatprep.mubr.bf16.mxu0 0
    %1637 = vmatmul.mubr.bf16.gmra.mrb[0].mxu0 %v1531
    %v1638 = vpop.f32.mrb[0].mxu0
    %v1639 = vadd.f32 %v1554, %v1638
    %v1640 = vpop.f32.mrb[0].mxu0
    %v1641 = vpop.f32.mrb[0].mxu0
    %v1642 = vadd.f32 %v1554, %v1641
    %v1643 = vpop.f32.mrb[0].mxu0
    %1644 = vmatprep.mubr.bf16.mxu0 0
    %1645 = vmatmul.mubr.bf16.gmra.mrb[0].mxu0 %v1532
    %v1646 = vpop.f32.mrb[0].mxu0
    %v1647 = vadd.f32 %v1554, %v1646
    %v1648 = vpop.f32.mrb[0].mxu0
    %v1649 = vpop.f32.mrb[0].mxu0
    %v1650 = vadd.f32 %v1554, %v1649
    %v1651 = vpop.f32.mrb[0].mxu0
    %1652 = vdwg.mxu0
    %v1653 = vpack.c.bf16 %v1642, %v1639
    %v1654 = vpack.c.bf16 %v1650, %v1647
    %v1655 = vld [vmem:[#allocation15] sm:$0xff]
    %v1656 = vld [vmem:[#allocation15 + $0x8] sm:$0xff]
    %v1657 = vld [vmem:[#allocation15 + $0x10] sm:$0xff]
    %v1658 = vld [vmem:[#allocation15 + $0x18] sm:$0xff]
    %v1659 = vld [vmem:[#allocation15 + $0x20] sm:$0xff]
    %v1660 = vld [vmem:[#allocation15 + $0x28] sm:$0xff]
    %v1661 = vld [vmem:[#allocation15 + $0x30] sm:$0xff]
    %v1662 = vld [vmem:[#allocation15 + $0x38] sm:$0xff]
    %v1663 = vld [vmem:[#allocation15 + $0x40] sm:$0xff]
    %v1664 = vld [vmem:[#allocation15 + $0x48] sm:$0xff]
    %v1665 = vld [vmem:[#allocation15 + $0x50] sm:$0xff]
    %v1666 = vld [vmem:[#allocation15 + $0x58] sm:$0xff]
    %v1667 = vld [vmem:[#allocation15 + $0x60] sm:$0xff]
    %v1668 = vld [vmem:[#allocation15 + $0x68] sm:$0xff]
    %v1669 = vld [vmem:[#allocation15 + $0x70] sm:$0xff]
    %v1670 = vld [vmem:[#allocation15 + $0x78] sm:$0xff]
    %v1671 = vld [vmem:[%s11] sm:$0x3]
    %v1673 = vlaneseq
    %v1674 = vshrl.u32 %v1673, 7
    %v1675 = vsub.s32 0, %v1674
    %v1676 = vrot.slane %v1671, %v1675
    %v1677 = vlaneseq
    %v1678 = vshrl.u32 %v1677, 7
    %v1679 = vsub.s32 1, %v1678
    %v1680 = vrot.slane %v1671, %v1679
    %v1699 = vunpack.c.l.b16 %v1655
    %v1700 = vunpack.c.h.b16 %v1655
    %v1701 = vunpack.c.l.b16 %v1656
    %v1702 = vunpack.c.h.b16 %v1656
    %v1703 = vunpack.c.l.b16 %v1657
    %v1704 = vunpack.c.h.b16 %v1657
    %v1705 = vunpack.c.l.b16 %v1658
    %v1706 = vunpack.c.h.b16 %v1658
    %v1707 = vunpack.c.l.b16 %v1659
    %v1708 = vunpack.c.h.b16 %v1659
    %v1709 = vunpack.c.l.b16 %v1660
    %v1710 = vunpack.c.h.b16 %v1660
    %v1711 = vunpack.c.l.b16 %v1661
    %v1712 = vunpack.c.h.b16 %v1661
    %v1713 = vunpack.c.l.b16 %v1662
    %v1714 = vunpack.c.h.b16 %v1662
    %v1715 = vunpack.c.l.b16 %v1663
    %v1716 = vunpack.c.h.b16 %v1663
    %v1717 = vunpack.c.l.b16 %v1664
    %v1718 = vunpack.c.h.b16 %v1664
    %v1719 = vunpack.c.l.b16 %v1665
    %v1720 = vunpack.c.h.b16 %v1665
    %v1721 = vunpack.c.l.b16 %v1666
    %v1722 = vunpack.c.h.b16 %v1666
    %v1723 = vunpack.c.l.b16 %v1667
    %v1724 = vunpack.c.h.b16 %v1667
    %v1725 = vunpack.c.l.b16 %v1668
    %v1726 = vunpack.c.h.b16 %v1668
    %v1727 = vunpack.c.l.b16 %v1669
    %v1728 = vunpack.c.h.b16 %v1669
    %v1729 = vunpack.c.l.b16 %v1670
    %v1730 = vunpack.c.h.b16 %v1670
    %v1731 = vpack.c.b16 %v1701, %v1699
    %v1732 = vpack.c.b16 %v1702, %v1700
    %v1733 = vpack.c.b16 %v1705, %v1703
    %v1734 = vpack.c.b16 %v1706, %v1704
    %v1735 = vpack.c.b16 %v1709, %v1707
    %v1736 = vpack.c.b16 %v1710, %v1708
    %v1737 = vpack.c.b16 %v1713, %v1711
    %v1738 = vpack.c.b16 %v1714, %v1712
    %v1739 = vpack.c.b16 %v1717, %v1715
    %v1740 = vpack.c.b16 %v1718, %v1716
    %v1741 = vpack.c.b16 %v1721, %v1719
    %v1742 = vpack.c.b16 %v1722, %v1720
    %v1743 = vpack.c.b16 %v1725, %v1723
    %v1744 = vpack.c.b16 %v1726, %v1724
    %v1745 = vpack.c.b16 %v1729, %v1727
    %v1746 = vpack.c.b16 %v1730, %v1728
    %1763 = vmatprep.subr.bf16.mxu0 %v1732
    %1764 = vmatpush1.bf16.msra.mxu0 %v1731
    %1765 = vmatprep.subr.bf16.mxu0 %v1734
    %1766 = vmatpush1.bf16.msra.mxu0 %v1733
    %1767 = vmatprep.subr.bf16.mxu0 %v1736
    %1768 = vmatpush1.bf16.msra.mxu0 %v1735
    %1769 = vmatprep.subr.bf16.mxu0 %v1738
    %1770 = vmatpush1.bf16.msra.mxu0 %v1737
    %1771 = vmatprep.subr.bf16.mxu0 %v1740
    %1772 = vmatpush1.bf16.msra.mxu0 %v1739
    %1773 = vmatprep.subr.bf16.mxu0 %v1742
    %1774 = vmatpush1.bf16.msra.mxu0 %v1741
    %1775 = vmatprep.subr.bf16.mxu0 %v1744
    %1776 = vmatpush1.bf16.msra.mxu0 %v1743
    %1777 = vmatprep.subr.bf16.mxu0 %v1746
    %1778 = vmatpush1.bf16.msra.mxu0 %v1745
    %1779 = vmatprep.subr.bf16.mxu0 0
    %1780 = vmatpush1.bf16.msra.mxu0 0
    %1781 = vmatprep.subr.bf16.mxu0 0
    %1782 = vmatpush1.bf16.msra.mxu0 0
    %1783 = vmatprep.subr.bf16.mxu0 0
    %1784 = vmatpush1.bf16.msra.mxu0 0
    %1785 = vmatprep.subr.bf16.mxu0 0
    %1786 = vmatpush1.bf16.msra.mxu0 0
    %1787 = vmatprep.subr.bf16.mxu0 0
    %1788 = vmatpush1.bf16.msra.mxu0 0
    %1789 = vmatprep.subr.bf16.mxu0 0
    %1790 = vmatpush1.bf16.msra.mxu0 0
    %1791 = vmatprep.subr.bf16.mxu0 0
    %1792 = vmatpush1.bf16.msra.mxu0 0
    %1793 = vmatprep.subr.bf16.mxu0 0
    %1794 = vmatpush1.bf16.msra.mxu0 0
    %1795 = vmatprep.mubr.bf16.mxu0 0
    %1796 = vmatmul.mubr.bf16.gmra.mrb[0].mxu0 %v1653
    %v1797 = vpop.f32.mrb[0].mxu0
    %v1798 = vadd.f32 %v1676, %v1797
    %v1799 = vpop.f32.mrb[0].mxu0
    %v1800 = vadd.f32 %v1680, %v1799
    %v1801 = vpop.f32.mrb[0].mxu0
    %v1802 = vadd.f32 %v1676, %v1801
    %v1803 = vpop.f32.mrb[0].mxu0
    %v1804 = vadd.f32 %v1680, %v1803
    %1805 = vmatprep.mubr.bf16.mxu0 0
    %1806 = vmatmul.mubr.bf16.gmra.mrb[0].mxu0 %v1654
    %v1807 = vpop.f32.mrb[0].mxu0
    %v1808 = vadd.f32 %v1676, %v1807
    %v1809 = vpop.f32.mrb[0].mxu0
    %v1810 = vadd.f32 %v1680, %v1809
    %v1811 = vpop.f32.mrb[0].mxu0
    %v1812 = vadd.f32 %v1676, %v1811
    %v1813 = vpop.f32.mrb[0].mxu0
    %v1814 = vadd.f32 %v1680, %v1813
    %1815 = vdwg.mxu0
    %s1816 = sld [smem:[#allocation2]]
    %v1817 = vstv %s1816
    %v1818 = vmul.f32 %v1817, %v1798
    %v1819 = vmul.f32 %v1817, %v1802
    %v1820 = vmul.f32 %v1817, %v1808
    %v1821 = vmul.f32 %v1817, %v1812
    %v1822 = vxor.u32 %v1818, 2147483648
    %v1823 = vxor.u32 %v1819, 2147483648
    %v1824 = vxor.u32 %v1820, 2147483648
    %v1825 = vxor.u32 %v1821, 2147483648
    %v1826 = vmul.f32 %v1822, 1.442695
    %v1827 = vpow.pop %v1826
    %v1828 = vmul.f32 %v1823, 1.442695
    %v1829 = vpow.pop %v1828
    %v1830 = vmul.f32 %v1824, 1.442695
    %v1831 = vpow.pop %v1830
    %v1832 = vmul.f32 %v1825, 1.442695
    %v1833 = vpow.pop %v1832
    %v1834 = vadd.f32 %v1827, 1.0
    %v1835 = vadd.f32 %v1829, 1.0
    %v1836 = vadd.f32 %v1831, 1.0
    %v1837 = vadd.f32 %v1833, 1.0
    %v1838 = vrcp.pop %v1834
    %v1839 = vmul.f32 1.0, %v1838
    %v1840 = vrcp.pop %v1835
    %v1841 = vmul.f32 1.0, %v1840
    %v1842 = vrcp.pop %v1836
    %v1843 = vmul.f32 1.0, %v1842
    %v1844 = vrcp.pop %v1837
    %v1845 = vmul.f32 1.0, %v1844
    %v1846 = vmul.f32 %v1798, %v1839
    %v1847 = vmul.f32 %v1802, %v1841
    %v1848 = vmul.f32 %v1808, %v1843
    %v1849 = vmul.f32 %v1812, %v1845
    %v1850 = vmul.f32 %v1846, %v1800
    %v1851 = vmul.f32 %v1847, %v1804
    %v1852 = vmul.f32 %v1848, %v1810
    %v1853 = vmul.f32 %v1849, %v1814
    %v1854 = vadd.f32 %v1527, %v1850
    %v1855 = vadd.f32 %v1528, %v1851
    %v1856 = vadd.f32 %v1529, %v1852
    %v1857 = vadd.f32 %v1530, %v1853
    %1858 = vst [vmem:[#allocation17] sm:$0xff] %v1854
    %1859 = vst [vmem:[#allocation17 + $0x8] sm:$0xff] %v1855
    %1860 = vst [vmem:[#allocation17 + $0x10] sm:$0xff] %v1856
    %1861 = vst [vmem:[#allocation17 + $0x18] sm:$0xff] %v1857
    // Predicated region
    $region86: #{tpu_custom_call.1} parent=1 // pred_check
      _
    $region87: #{tpu_custom_call.1} parent=1 // pred_check_branch
      %1863 = sbr.rel (0) target = $region89
    $region88: #{tpu_custom_call.1} parent=1 // pred_region
      %s1865 = ssub.s32 512, 512
      %1866 = vsyncadd [#allocation5], %s1865
      %s1867 = sshll.u32 [#allocation17], 4
      %s1868 = int_to_ptr.vmem [resolvable:$true] %s1867
      %1873 = dma.vmem_to_hbm [thread:$0]  %s1868, 512, %s13, [#allocation5], 128, 128, 8
    $region89: #{tpu_custom_call.1} parent=1 // pred_fallthru
      _
    // Predicated region
    $region90: #{tpu_custom_call.1} parent=1 // pred_check
      _
    $region91: #{tpu_custom_call.1} parent=1 // pred_check_branch
      %1875 = sbr.rel (0) target = $region93
    $region92: #{tpu_custom_call.1} parent=1 // pred_region
      %1876 = dma.done [#allocation5], 512
    $region93: #{tpu_custom_call.1} parent=1 // pred_fallthru
      _
    %1877 = vsyncpa [#allocation4], 1
    %1878 = vsyncpa [#allocation7], 1
    %1879 = vsyncpa [#allocation10], 1
    %1880 = vsyncpa [#allocation13], 1
    %1881 = vsyncpa [#allocation16], 1
    %1882 = vsyncpa [#allocation5], 1

</llo_original>
